<compile_context>
chip_gen: v7x
topology: tpu7x:2x2x1
jax: 0.10.0
libtpu: 0.0.40
codegen_flags: <defaults>
</compile_context>

<pallas_src>
import functools

import jax
import jax.numpy as jnp
from jax import lax
from jax.experimental import pallas as pl
from jax.experimental.pallas import tpu as pltpu


def _round_up(x, m):
    return ((x + m - 1) // m) * m


# --------------------------------------------------------------------------- #
# Shared spatial-gate helper: ChannelPool + 7x7 "same" conv + sigmoid + gate.  #
# out_ref must already hold the channel-gated tensor xs = x * cscale.          #
# --------------------------------------------------------------------------- #
def _spatial_conv_gate(out_ref, cpad_ref, wcol_ref, bconv, *, H, W, LPAD):
    K = 7
    R = K // 2
    HW = H * W

    xs = out_ref[0]                                            # (C, HW) gated tensor
    comp = jnp.concatenate(
        [jnp.max(xs, axis=0, keepdims=True),                   # ChannelPool max
         jnp.mean(xs, axis=0, keepdims=True)], axis=0)         # ChannelPool mean -> (2, HW)

    # Stage comp pre-shifted by each row offset (kh-R)*W on sublanes 2*kh + c.
    # Zero fill provides both the top/bottom conv padding and the slack strips;
    # re-zeroed every step because the scratch persists across (per-core) grid steps.
    cpad_ref[...] = jnp.zeros(cpad_ref.shape, jnp.float32)
    for kh in range(K):
        off = LPAD - (kh - R) * W
        cpad_ref[2 * kh:2 * kh + 2, off:off + HW] = comp

    # Per-kw column-validity mask (kills taps that wrap across a row boundary),
    # hoisted out of the (c, kh) sum: 7 selects total.
    col = lax.broadcasted_iota(jnp.int32, (1, HW), 1) % W

    acc = jnp.full((1, HW), bconv, jnp.float32)
    for kw in range(K):
        dw = kw - R
        tap = cpad_ref[:, LPAD + dw:LPAD + dw + HW]            # (14, HW) single slice
        wcol = wcol_ref[:, kw:kw + 1]                          # (14, 1) per-sublane weights
        contrib = jnp.sum(tap * wcol, axis=0, keepdims=True)   # cross-sublane (XLU) sum
        ok = jnp.logical_and(col + dw >= 0, col + dw < W)
        acc = acc + jnp.where(ok, contrib, 0.0)

    out_ref[0] = out_ref[0] * jax.nn.sigmoid(acc)              # spatial gate


# --------------------------------------------------------------------------- #
# Fused kernel: pool + MLP + channel gate + spatial gate, one image per step.  #
# --------------------------------------------------------------------------- #
def _cbam_fused_kernel(bc_ref, x_ref, w1_ref, b1_ref, w2_ref, b2_ref, wcol_ref,
                       out_ref, cpad_ref, *, H, W, LPAD, inv_hw):
    x = x_ref[0]                                               # (C, HW), HW on lanes

    # ChannelGate: global avg/max pool (lane reductions) + tiny shared MLP on VPU.
    v_avg = jnp.sum(x, axis=1, keepdims=True) * inv_hw         # (C, 1)
    v_max = jnp.max(x, axis=1, keepdims=True)                  # (C, 1)

    def mlp(v):                                                # v: (C, 1)
        h = jnp.sum(v * w1_ref[...], axis=0, keepdims=True) + b1_ref[...]   # (1, Ch)
        h = jnp.maximum(h, 0.0)
        return jnp.sum(h * w2_ref[...], axis=1, keepdims=True) + b2_ref[...]  # (C, 1)

    cscale = jax.nn.sigmoid(mlp(v_avg) + mlp(v_max))           # (C, 1)

    # Stash the channel-gated tensor in the output block (bounds its live range).
    out_ref[0] = x * cscale

    # SpatialGate: ChannelPool + 7x7 conv + sigmoid + gate, all on the VMEM block.
    _spatial_conv_gate(out_ref, cpad_ref, wcol_ref, bc_ref[0], H=H, W=W, LPAD=LPAD)


# --------------------------------------------------------------------------- #
# Fallback path (large images): HW-tiled pooling kernel + gate kernel.         #
# --------------------------------------------------------------------------- #
def _pool_kernel(x_ref, stat_ref, sum_acc, max_acc, *, inv_hw):
    t = pl.program_id(1)
    x = x_ref[0]                                               # (C, THW)

    @pl.when(t == 0)
    def _():
        sum_acc[...] = jnp.zeros_like(sum_acc)
        max_acc[...] = jnp.full_like(max_acc, -jnp.inf)

    sum_acc[...] += jnp.sum(x, axis=1, keepdims=True)
    max_acc[...] = jnp.maximum(max_acc[...], jnp.max(x, axis=1, keepdims=True))

    @pl.when(t == pl.num_programs(1) - 1)
    def _():
        stat_ref[0, :, 0:1] = sum_acc[...] * inv_hw
        stat_ref[0, :, 1:2] = max_acc[...]


def _gate_kernel(bc_ref, cscale_ref, x_ref, wcol_ref, out_ref, cpad_ref,
                 *, H, W, LPAD):
    out_ref[0] = x_ref[0] * cscale_ref[0]                      # channel gate
    _spatial_conv_gate(out_ref, cpad_ref, wcol_ref, bc_ref[0], H=H, W=W, LPAD=LPAD)


def _pick_hw_tile(hw, c, vmem_budget):
    """Largest multiple of 128 dividing hw under a VMEM-aware cap."""
    cap_elems = max(128, (vmem_budget // 4) // (c * 4))        # ~2 double-buffered blocks
    cap = (cap_elems // 128) * 128
    best = None
    t = 128
    while t <= min(hw, cap):
        if hw % t == 0:
            best = t
        t += 128
    return best if best is not None else hw


# --------------------------------------------------------------------------- #
# Wrapper.                                                                     #
# --------------------------------------------------------------------------- #
def cbam_forward(x, params):
    W1, b1, W2, b2, Wc, bc = params
    N, C, H, W = x.shape
    HW = H * W
    K, R = 7, 3
    Ch = W1.shape[0]

    LPAD = _round_up(R * W + R, 128)
    HWP = _round_up(LPAD + R * W + HW, 128)

    x_flat = x.reshape(N, C, HW)            # NCHW is already contiguous (N, C, H*W)

    # Conv weight as a (14, 7) table: row 2*kh + c holds Wc[0, c, kh, :].
    wcol = jnp.transpose(Wc[0], (1, 0, 2)).reshape(2 * K, K).astype(jnp.float32)
    # MLP weights laid out for in-kernel VPU use.
    w1p = jnp.transpose(W1)                  # (C, Ch)
    b1r = b1.reshape(1, Ch)
    w2p = W2                                 # (C, Ch)
    b2r = b2.reshape(C, 1)

    VMEM_BUDGET = 32 << 20                   # safe on v5e/v6e/v7x; set explicitly
    blocks_bytes = 4 * C * HW * 4            # in + out blocks, double-buffered
    scratch_bytes = 2 * K * HWP * 4
    fused_ok = blocks_bytes + scratch_bytes + (1 << 20) <= (VMEM_BUDGET * 3) // 4

    if fused_ok:
        out_flat = pl.pallas_call(
            functools.partial(_cbam_fused_kernel, H=H, W=W, LPAD=LPAD, inv_hw=1.0 / HW),
            out_shape=jax.ShapeDtypeStruct((N, C, HW), jnp.float32),
            grid=(N,),
            in_specs=[
                pl.BlockSpec(memory_space=pltpu.MemorySpace.SMEM),    # conv bias (1,)
                pl.BlockSpec((1, C, HW), lambda n: (n, 0, 0)),        # x, lane-dense
                pl.BlockSpec((C, Ch), lambda n: (0, 0)),              # W1.T
                pl.BlockSpec((1, Ch), lambda n: (0, 0)),              # b1
                pl.BlockSpec((C, Ch), lambda n: (0, 0)),              # W2
                pl.BlockSpec((C, 1), lambda n: (0, 0)),               # b2
                pl.BlockSpec((2 * K, K), lambda n: (0, 0)),           # conv weight table
            ],
            out_specs=pl.BlockSpec((1, C, HW), lambda n: (n, 0, 0)),
            scratch_shapes=[pltpu.VMEM((2 * K, HWP), jnp.float32)],
            compiler_params=pltpu.CompilerParams(
                dimension_semantics=("parallel",),
                vmem_limit_bytes=VMEM_BUDGET),
        )(bc, x_flat, w1p, b1r, w2p, b2r, wcol)
        return out_flat.reshape(N, C, H, W)

    # ---- Large-image fallback: HW-tiled pooling + XLA MLP + gate kernel ----
    # TODO(synk): halo-tile HW here as well when one (C, HW) image exceeds VMEM.
    THW = _pick_hw_tile(HW, C, VMEM_BUDGET)
    stats = pl.pallas_call(
        functools.partial(_pool_kernel, inv_hw=1.0 / HW),
        out_shape=jax.ShapeDtypeStruct((N, C, 2), jnp.float32),
        grid=(N, HW // THW),
        in_specs=[pl.BlockSpec((1, C, THW), lambda n, t: (n, 0, t))],
        out_specs=pl.BlockSpec((1, C, 2), lambda n, t: (n, 0, 0)),
        scratch_shapes=[pltpu.VMEM((C, 1), jnp.float32),
                        pltpu.VMEM((C, 1), jnp.float32)],
        compiler_params=pltpu.CompilerParams(
            dimension_semantics=("parallel", "arbitrary"),
            vmem_limit_bytes=VMEM_BUDGET),
    )(x_flat)

    avg, mx = stats[..., 0], stats[..., 1]

    def mlp(v):
        return jnp.maximum(v @ W1.T + b1, 0.0) @ W2.T + b2

    cscale = jax.nn.sigmoid(mlp(avg) + mlp(mx)).reshape(N, C, 1)

    out_flat = pl.pallas_call(
        functools.partial(_gate_kernel, H=H, W=W, LPAD=LPAD),
        out_shape=jax.ShapeDtypeStruct((N, C, HW), jnp.float32),
        grid=(N,),
        in_specs=[
            pl.BlockSpec(memory_space=pltpu.MemorySpace.SMEM),        # conv bias (1,)
            pl.BlockSpec((1, C, 1), lambda n: (n, 0, 0)),             # channel scale
            pl.BlockSpec((1, C, HW), lambda n: (n, 0, 0)),            # x
            pl.BlockSpec((2 * K, K), lambda n: (0, 0)),               # conv weight table
        ],
        out_specs=pl.BlockSpec((1, C, HW), lambda n: (n, 0, 0)),
        scratch_shapes=[pltpu.VMEM((2 * K, HWP), jnp.float32)],
        compiler_params=pltpu.CompilerParams(
            dimension_semantics=("parallel",),
            vmem_limit_bytes=VMEM_BUDGET),
    )(bc, cscale, x_flat, wcol)
    return out_flat.reshape(N, C, H, W)


# --------------------------------------------------------------------------- #
# Pure-JAX reference reproducing the PyTorch forward.                          #
# --------------------------------------------------------------------------- #
def cbam_reference(x, params):
    W1, b1, W2, b2, Wc, bc = params
    avg = jnp.mean(x, axis=(2, 3))
    mx = jnp.max(x, axis=(2, 3))

    def mlp(v):
        h = jnp.maximum(v @ W1.T + b1, 0.0)
        return h @ W2.T + b2

    att = mlp(avg) + mlp(mx)
    s = jax.nn.sigmoid(att)[:, :, None, None]
    xc = x * s
    cmax = jnp.max(xc, axis=1, keepdims=True)
    cmean = jnp.mean(xc, axis=1, keepdims=True)
    comp = jnp.concatenate([cmax, cmean], axis=1)
    conv = lax.conv_general_dilated(
        comp, Wc, window_strides=(1, 1), padding=((3, 3), (3, 3)),
        dimension_numbers=("NCHW", "OIHW", "NCHW")) + bc.reshape(1, 1, 1, 1)
    return xc * jax.nn.sigmoid(conv)


if __name__ == "__main__":
    base, reduction, H, W, N = 32, 16, 16, 16, 2
    Ch = base // reduction

    key = jax.random.PRNGKey(0)
    ks = jax.random.split(key, 7)
    x = jax.random.normal(ks[0], (N, base, H, W), jnp.float32)
    W1 = 0.1 * jax.random.normal(ks[1], (Ch, base), jnp.float32)
    b1 = 0.1 * jax.random.normal(ks[2], (Ch,), jnp.float32)
    W2 = 0.1 * jax.random.normal(ks[3], (base, Ch), jnp.float32)
    b2 = 0.1 * jax.random.normal(ks[4], (base,), jnp.float32)
    Wc = 0.1 * jax.random.normal(ks[5], (1, 2, 7, 7), jnp.float32)
    bc = 0.1 * jax.random.normal(ks[6], (1,), jnp.float32)
    params = (W1, b1, W2, b2, Wc, bc)

    out = jax.jit(cbam_forward)(x, params)
    out = jax.block_until_ready(out)

    ref = cbam_reference(x, params)
    assert out.shape == ref.shape and out.dtype == ref.dtype
    assert jnp.allclose(out, ref, rtol=2e-4, atol=2e-4), "mismatch vs reference"

    print("KERNEL_OK")
</pallas_src>

<mosaic_0001>
module attributes {stable_mosaic.version = 11 : i64} {
  func.func @_cbam_fused_kernel(%arg0: i32, %arg1: memref<1xf32, #tpu.memory_space<smem>>, %arg2: memref<1x32x256xf32, #tpu.memory_space<vmem>>, %arg3: memref<32x2xf32, #tpu.memory_space<vmem>>, %arg4: memref<1x2xf32, #tpu.memory_space<vmem>>, %arg5: memref<32x2xf32, #tpu.memory_space<vmem>>, %arg6: memref<32x1xf32, #tpu.memory_space<vmem>>, %arg7: memref<14x7xf32, #tpu.memory_space<vmem>>, %arg8: memref<1x32x256xf32, #tpu.memory_space<vmem>>, %arg9: memref<14x512xf32, #tpu.memory_space<vmem>>) attributes {dimension_semantics = [#tpu.dimension_semantics<parallel>], iteration_bounds = array<i64: 2>, scalar_prefetch = 0 : i64, scratch_operands = 1 : i64, tpu.core_type = #tpu.core_type<tc>, window_params = [{transform_indices = @transform_0, window_bounds = array<i64: 1>}, {transform_indices = @transform_1, window_bounds = array<i64: 1, 32, 256>}, {pipeline_mode = #tpu.pipeline_mode<synchronous>, transform_indices = @transform_2, window_bounds = array<i64: 32, 2>}, {pipeline_mode = #tpu.pipeline_mode<synchronous>, transform_indices = @transform_3, window_bounds = array<i64: 1, 2>}, {pipeline_mode = #tpu.pipeline_mode<synchronous>, transform_indices = @transform_4, window_bounds = array<i64: 32, 2>}, {pipeline_mode = #tpu.pipeline_mode<synchronous>, transform_indices = @transform_5, window_bounds = array<i64: 32, 1>}, {pipeline_mode = #tpu.pipeline_mode<synchronous>, transform_indices = @transform_6, window_bounds = array<i64: 14, 7>}, {transform_indices = @transform_7, window_bounds = array<i64: 1, 32, 256>}]} {
    %c0 = arith.constant 0 : index
    %c0_0 = arith.constant 0 : index
    %c0_1 = arith.constant 0 : index
    %0 = vector.load %arg2[%c0, %c0_0, %c0_1] : memref<1x32x256xf32, #tpu.memory_space<vmem>>, vector<1x32x256xf32>
    %1 = vector.shape_cast %0 : vector<1x32x256xf32> to vector<32x256xf32>
    %cst = arith.constant dense<0.000000e+00> : vector<32xf32>
    %2 = vector.multi_reduction <add>, %1, %cst [1] : vector<32x256xf32> to vector<32xf32>
    %3 = vector.shape_cast %2 : vector<32xf32> to vector<32x1xf32>
    %cst_2 = arith.constant 3.906250e-03 : f32
    %4 = vector.broadcast %cst_2 : f32 to vector<32x1xf32>
    %5 = arith.mulf %3, %4 : vector<32x1xf32>
    %cst_3 = arith.constant dense<0xFF800000> : vector<32xf32>
    %6 = vector.multi_reduction <maximumf>, %1, %cst_3 [1] : vector<32x256xf32> to vector<32xf32>
    %7 = vector.shape_cast %6 : vector<32xf32> to vector<32x1xf32>
    %c0_4 = arith.constant 0 : index
    %c0_5 = arith.constant 0 : index
    %8 = vector.load %arg3[%c0_4, %c0_5] : memref<32x2xf32, #tpu.memory_space<vmem>>, vector<32x2xf32>
    %9 = vector.broadcast %5 : vector<32x1xf32> to vector<32x2xf32>
    %10 = arith.mulf %9, %8 : vector<32x2xf32>
    %cst_6 = arith.constant dense<0.000000e+00> : vector<2xf32>
    %11 = vector.multi_reduction <add>, %10, %cst_6 [0] : vector<32x2xf32> to vector<2xf32>
    %12 = vector.shape_cast %11 : vector<2xf32> to vector<1x2xf32>
    %c0_7 = arith.constant 0 : index
    %c0_8 = arith.constant 0 : index
    %13 = vector.load %arg4[%c0_7, %c0_8] : memref<1x2xf32, #tpu.memory_space<vmem>>, vector<1x2xf32>
    %14 = arith.addf %12, %13 : vector<1x2xf32>
    %cst_9 = arith.constant 0.000000e+00 : f32
    %15 = vector.broadcast %cst_9 : f32 to vector<1x2xf32>
    %16 = arith.maximumf %14, %15 : vector<1x2xf32>
    %c0_10 = arith.constant 0 : index
    %c0_11 = arith.constant 0 : index
    %17 = vector.load %arg5[%c0_10, %c0_11] : memref<32x2xf32, #tpu.memory_space<vmem>>, vector<32x2xf32>
    %18 = vector.broadcast %16 : vector<1x2xf32> to vector<32x2xf32>
    %19 = arith.mulf %18, %17 : vector<32x2xf32>
    %cst_12 = arith.constant dense<0.000000e+00> : vector<32xf32>
    %20 = vector.multi_reduction <add>, %19, %cst_12 [1] : vector<32x2xf32> to vector<32xf32>
    %21 = vector.shape_cast %20 : vector<32xf32> to vector<32x1xf32>
    %c0_13 = arith.constant 0 : index
    %c0_14 = arith.constant 0 : index
    %22 = vector.load %arg6[%c0_13, %c0_14] : memref<32x1xf32, #tpu.memory_space<vmem>>, vector<32x1xf32>
    %23 = arith.addf %21, %22 : vector<32x1xf32>
    %c0_15 = arith.constant 0 : index
    %c0_16 = arith.constant 0 : index
    %24 = vector.load %arg3[%c0_15, %c0_16] : memref<32x2xf32, #tpu.memory_space<vmem>>, vector<32x2xf32>
    %25 = vector.broadcast %7 : vector<32x1xf32> to vector<32x2xf32>
    %26 = arith.mulf %25, %24 : vector<32x2xf32>
    %cst_17 = arith.constant dense<0.000000e+00> : vector<2xf32>
    %27 = vector.multi_reduction <add>, %26, %cst_17 [0] : vector<32x2xf32> to vector<2xf32>
    %28 = vector.shape_cast %27 : vector<2xf32> to vector<1x2xf32>
    %c0_18 = arith.constant 0 : index
    %c0_19 = arith.constant 0 : index
    %29 = vector.load %arg4[%c0_18, %c0_19] : memref<1x2xf32, #tpu.memory_space<vmem>>, vector<1x2xf32>
    %30 = arith.addf %28, %29 : vector<1x2xf32>
    %cst_20 = arith.constant 0.000000e+00 : f32
    %31 = vector.broadcast %cst_20 : f32 to vector<1x2xf32>
    %32 = arith.maximumf %30, %31 : vector<1x2xf32>
    %c0_21 = arith.constant 0 : index
    %c0_22 = arith.constant 0 : index
    %33 = vector.load %arg5[%c0_21, %c0_22] : memref<32x2xf32, #tpu.memory_space<vmem>>, vector<32x2xf32>
    %34 = vector.broadcast %32 : vector<1x2xf32> to vector<32x2xf32>
    %35 = arith.mulf %34, %33 : vector<32x2xf32>
    %cst_23 = arith.constant dense<0.000000e+00> : vector<32xf32>
    %36 = vector.multi_reduction <add>, %35, %cst_23 [1] : vector<32x2xf32> to vector<32xf32>
    %37 = vector.shape_cast %36 : vector<32xf32> to vector<32x1xf32>
    %c0_24 = arith.constant 0 : index
    %c0_25 = arith.constant 0 : index
    %38 = vector.load %arg6[%c0_24, %c0_25] : memref<32x1xf32, #tpu.memory_space<vmem>>, vector<32x1xf32>
    %39 = arith.addf %37, %38 : vector<32x1xf32>
    %40 = arith.addf %23, %39 : vector<32x1xf32>
    %41 = arith.negf %40 : vector<32x1xf32>
    %42 = math.exp %41 : vector<32x1xf32>
    %cst_26 = arith.constant 1.000000e+00 : f32
    %43 = vector.broadcast %cst_26 : f32 to vector<32x1xf32>
    %44 = arith.addf %43, %42 : vector<32x1xf32>
    %45 = arith.divf %43, %44 : vector<32x1xf32>
    %46 = vector.broadcast %45 : vector<32x1xf32> to vector<32x256xf32>
    %47 = arith.mulf %1, %46 : vector<32x256xf32>
    %c0_27 = arith.constant 0 : index
    %c0_28 = arith.constant 0 : index
    %c0_29 = arith.constant 0 : index
    %48 = vector.load %arg8[%c0_27, %c0_28, %c0_29] : memref<1x32x256xf32, #tpu.memory_space<vmem>>, vector<1x32x256xf32>
    %49 = vector.shape_cast %48 : vector<1x32x256xf32> to vector<32x256xf32>
    %50 = vector.shape_cast %47 : vector<32x256xf32> to vector<1x32x256xf32>
    tpu.vector_store %arg8[%c0_27, %c0_28, %c0_29], %50 {strides = array<i32>} : memref<1x32x256xf32, #tpu.memory_space<vmem>>, vector<1x32x256xf32>,
    %c0_30 = arith.constant 0 : index
    %51 = memref.load %arg1[%c0_30] : memref<1xf32, #tpu.memory_space<smem>>
    %c0_31 = arith.constant 0 : index
    %c0_32 = arith.constant 0 : index
    %c0_33 = arith.constant 0 : index
    %52 = vector.load %arg8[%c0_31, %c0_32, %c0_33] : memref<1x32x256xf32, #tpu.memory_space<vmem>>, vector<1x32x256xf32>
    %53 = vector.shape_cast %52 : vector<1x32x256xf32> to vector<32x256xf32>
    %cst_34 = arith.constant dense<0xFF800000> : vector<256xf32>
    %54 = vector.multi_reduction <maximumf>, %53, %cst_34 [0] : vector<32x256xf32> to vector<256xf32>
    %55 = vector.shape_cast %54 : vector<256xf32> to vector<1x256xf32>
    %cst_35 = arith.constant dense<0.000000e+00> : vector<256xf32>
    %56 = vector.multi_reduction <add>, %53, %cst_35 [0] : vector<32x256xf32> to vector<256xf32>
    %57 = vector.shape_cast %56 : vector<256xf32> to vector<1x256xf32>
    %cst_36 = arith.constant 3.200000e+01 : f32
    %58 = vector.broadcast %cst_36 : f32 to vector<1x256xf32>
    %59 = arith.divf %57, %58 : vector<1x256xf32>
    %60 = tpu.concatenate %55, %59 in 0 : vector<1x256xf32>, vector<1x256xf32> -> vector<2x256xf32>
    %cst_37 = arith.constant 0.000000e+00 : f32
    %61 = vector.broadcast %cst_37 : f32 to vector<14x512xf32>
    %c0_38 = arith.constant 0 : index
    %c0_39 = arith.constant 0 : index
    %62 = vector.load %arg9[%c0_38, %c0_39] : memref<14x512xf32, #tpu.memory_space<vmem>>, vector<14x512xf32>
    tpu.vector_store %arg9[%c0_38, %c0_39], %61 {strides = array<i32>} : memref<14x512xf32, #tpu.memory_space<vmem>>, vector<14x512xf32>,
    %c0_40 = arith.constant 0 : index
    %c176 = arith.constant 176 : index
    %63 = vector.load %arg9[%c0_40, %c176] : memref<14x512xf32, #tpu.memory_space<vmem>>, vector<2x256xf32>
    tpu.vector_store %arg9[%c0_40, %c176], %60 {strides = array<i32>} : memref<14x512xf32, #tpu.memory_space<vmem>>, vector<2x256xf32>,
    %c2 = arith.constant 2 : index
    %c160 = arith.constant 160 : index
    %64 = vector.load %arg9[%c2, %c160] : memref<14x512xf32, #tpu.memory_space<vmem>>, vector<2x256xf32>
    tpu.vector_store %arg9[%c2, %c160], %60 {strides = array<i32>} : memref<14x512xf32, #tpu.memory_space<vmem>>, vector<2x256xf32>,
    %c4 = arith.constant 4 : index
    %c144 = arith.constant 144 : index
    %65 = vector.load %arg9[%c4, %c144] : memref<14x512xf32, #tpu.memory_space<vmem>>, vector<2x256xf32>
    tpu.vector_store %arg9[%c4, %c144], %60 {strides = array<i32>} : memref<14x512xf32, #tpu.memory_space<vmem>>, vector<2x256xf32>,
    %c6 = arith.constant 6 : index
    %c128 = arith.constant 128 : index
    %66 = vector.load %arg9[%c6, %c128] : memref<14x512xf32, #tpu.memory_space<vmem>>, vector<2x256xf32>
    tpu.vector_store %arg9[%c6, %c128], %60 {strides = array<i32>} : memref<14x512xf32, #tpu.memory_space<vmem>>, vector<2x256xf32>,
    %c8 = arith.constant 8 : index
    %c112 = arith.constant 112 : index
    %67 = vector.load %arg9[%c8, %c112] : memref<14x512xf32, #tpu.memory_space<vmem>>, vector<2x256xf32>
    tpu.vector_store %arg9[%c8, %c112], %60 {strides = array<i32>} : memref<14x512xf32, #tpu.memory_space<vmem>>, vector<2x256xf32>,
    %c10 = arith.constant 10 : index
    %c96 = arith.constant 96 : index
    %68 = vector.load %arg9[%c10, %c96] : memref<14x512xf32, #tpu.memory_space<vmem>>, vector<2x256xf32>
    tpu.vector_store %arg9[%c10, %c96], %60 {strides = array<i32>} : memref<14x512xf32, #tpu.memory_space<vmem>>, vector<2x256xf32>,
    %c12 = arith.constant 12 : index
    %c80 = arith.constant 80 : index
    %69 = vector.load %arg9[%c12, %c80] : memref<14x512xf32, #tpu.memory_space<vmem>>, vector<2x256xf32>
    tpu.vector_store %arg9[%c12, %c80], %60 {strides = array<i32>} : memref<14x512xf32, #tpu.memory_space<vmem>>, vector<2x256xf32>,
    %70 = tpu.iota {dimensions = array<i32: 1>} : vector<1x256xi32>
    %c16_i32 = arith.constant 16 : i32
    %c0_i32 = arith.constant 0 : i32
    %71 = arith.cmpi eq, %c16_i32, %c0_i32 : i32
    %c1_i32 = arith.constant 1 : i32
    %72 = arith.select %71, %c1_i32, %c16_i32 : i32
    %73 = vector.broadcast %72 : i32 to vector<1x256xi32>
    %74 = arith.remsi %70, %73 : vector<1x256xi32>
    %c0_i32_41 = arith.constant 0 : i32
    %75 = vector.broadcast %c0_i32_41 : i32 to vector<1x256xi32>
    %76 = arith.cmpi ne, %74, %75 : vector<1x256xi32>
    %c0_i32_42 = arith.constant 0 : i32
    %77 = vector.broadcast %c0_i32_42 : i32 to vector<1x256xi32>
    %78 = arith.cmpi slt, %74, %77 : vector<1x256xi32>
    %c0_i32_43 = arith.constant 0 : i32
    %79 = arith.cmpi slt, %72, %c0_i32_43 : i32
    %80 = vector.broadcast %79 : i1 to vector<1x256xi1>
    %81 = vector.broadcast %80 : vector<1x256xi1> to vector<1x256xi1>
    %82 = arith.xori %78, %81 : vector<1x256xi1>
    %83 = arith.andi %82, %76 : vector<1x256xi1>
    %84 = vector.broadcast %72 : i32 to vector<1x256xi32>
    %85 = arith.addi %74, %84 : vector<1x256xi32>
    %86 = arith.select %83, %85, %74 : vector<1x256xi1>, vector<1x256xi32>
    %87 = vector.broadcast %51 : f32 to vector<1x256xf32>
    %c0_44 = arith.constant 0 : index
    %c125 = arith.constant 125 : index
    %88 = vector.load %arg9[%c0_44, %c125] : memref<14x512xf32, #tpu.memory_space<vmem>>, vector<14x256xf32>
    %c0_45 = arith.constant 0 : index
    %c0_46 = arith.constant 0 : index
    %89 = vector.load %arg7[%c0_45, %c0_46] : memref<14x7xf32, #tpu.memory_space<vmem>>, vector<14x1xf32>
    %90 = vector.broadcast %89 : vector<14x1xf32> to vector<14x256xf32>
    %91 = arith.mulf %88, %90 : vector<14x256xf32>
    %cst_47 = arith.constant dense<0.000000e+00> : vector<256xf32>
    %92 = vector.multi_reduction <add>, %91, %cst_47 [0] : vector<14x256xf32> to vector<256xf32>
    %93 = vector.shape_cast %92 : vector<256xf32> to vector<1x256xf32>
    %c-3_i32 = arith.constant -3 : i32
    %94 = vector.broadcast %c-3_i32 : i32 to vector<1x256xi32>
    %95 = arith.addi %86, %94 : vector<1x256xi32>
    %c0_i32_48 = arith.constant 0 : i32
    %96 = vector.broadcast %c0_i32_48 : i32 to vector<1x256xi32>
    %97 = arith.cmpi sge, %95, %96 : vector<1x256xi32>
    %c-3_i32_49 = arith.constant -3 : i32
    %98 = vector.broadcast %c-3_i32_49 : i32 to vector<1x256xi32>
    %99 = arith.addi %86, %98 : vector<1x256xi32>
    %c16_i32_50 = arith.constant 16 : i32
    %100 = vector.broadcast %c16_i32_50 : i32 to vector<1x256xi32>
    %101 = arith.cmpi slt, %99, %100 : vector<1x256xi32>
    %102 = arith.andi %97, %101 : vector<1x256xi1>
    %cst_51 = arith.constant 0.000000e+00 : f32
    %103 = vector.broadcast %cst_51 : f32 to vector<1x256xf32>
    %104 = arith.select %102, %93, %103 : vector<1x256xi1>, vector<1x256xf32>
    %105 = arith.addf %87, %104 : vector<1x256xf32>
    %c0_52 = arith.constant 0 : index
    %c126 = arith.constant 126 : index
    %106 = vector.load %arg9[%c0_52, %c126] : memref<14x512xf32, #tpu.memory_space<vmem>>, vector<14x256xf32>
    %c0_53 = arith.constant 0 : index
    %c1 = arith.constant 1 : index
    %107 = vector.load %arg7[%c0_53, %c1] : memref<14x7xf32, #tpu.memory_space<vmem>>, vector<14x1xf32>
    %108 = vector.broadcast %107 : vector<14x1xf32> to vector<14x256xf32>
    %109 = arith.mulf %106, %108 : vector<14x256xf32>
    %cst_54 = arith.constant dense<0.000000e+00> : vector<256xf32>
    %110 = vector.multi_reduction <add>, %109, %cst_54 [0] : vector<14x256xf32> to vector<256xf32>
    %111 = vector.shape_cast %110 : vector<256xf32> to vector<1x256xf32>
    %c-2_i32 = arith.constant -2 : i32
    %112 = vector.broadcast %c-2_i32 : i32 to vector<1x256xi32>
    %113 = arith.addi %86, %112 : vector<1x256xi32>
    %c0_i32_55 = arith.constant 0 : i32
    %114 = vector.broadcast %c0_i32_55 : i32 to vector<1x256xi32>
    %115 = arith.cmpi sge, %113, %114 : vector<1x256xi32>
    %c-2_i32_56 = arith.constant -2 : i32
    %116 = vector.broadcast %c-2_i32_56 : i32 to vector<1x256xi32>
    %117 = arith.addi %86, %116 : vector<1x256xi32>
    %c16_i32_57 = arith.constant 16 : i32
    %118 = vector.broadcast %c16_i32_57 : i32 to vector<1x256xi32>
    %119 = arith.cmpi slt, %117, %118 : vector<1x256xi32>
    %120 = arith.andi %115, %119 : vector<1x256xi1>
    %cst_58 = arith.constant 0.000000e+00 : f32
    %121 = vector.broadcast %cst_58 : f32 to vector<1x256xf32>
    %122 = arith.select %120, %111, %121 : vector<1x256xi1>, vector<1x256xf32>
    %123 = arith.addf %105, %122 : vector<1x256xf32>
    %c0_59 = arith.constant 0 : index
    %c127 = arith.constant 127 : index
    %124 = vector.load %arg9[%c0_59, %c127] : memref<14x512xf32, #tpu.memory_space<vmem>>, vector<14x256xf32>
    %c0_60 = arith.constant 0 : index
    %c2_61 = arith.constant 2 : index
    %125 = vector.load %arg7[%c0_60, %c2_61] : memref<14x7xf32, #tpu.memory_space<vmem>>, vector<14x1xf32>
    %126 = vector.broadcast %125 : vector<14x1xf32> to vector<14x256xf32>
    %127 = arith.mulf %124, %126 : vector<14x256xf32>
    %cst_62 = arith.constant dense<0.000000e+00> : vector<256xf32>
    %128 = vector.multi_reduction <add>, %127, %cst_62 [0] : vector<14x256xf32> to vector<256xf32>
    %129 = vector.shape_cast %128 : vector<256xf32> to vector<1x256xf32>
    %c-1_i32 = arith.constant -1 : i32
    %130 = vector.broadcast %c-1_i32 : i32 to vector<1x256xi32>
    %131 = arith.addi %86, %130 : vector<1x256xi32>
    %c0_i32_63 = arith.constant 0 : i32
    %132 = vector.broadcast %c0_i32_63 : i32 to vector<1x256xi32>
    %133 = arith.cmpi sge, %131, %132 : vector<1x256xi32>
    %c-1_i32_64 = arith.constant -1 : i32
    %134 = vector.broadcast %c-1_i32_64 : i32 to vector<1x256xi32>
    %135 = arith.addi %86, %134 : vector<1x256xi32>
    %c16_i32_65 = arith.constant 16 : i32
    %136 = vector.broadcast %c16_i32_65 : i32 to vector<1x256xi32>
    %137 = arith.cmpi slt, %135, %136 : vector<1x256xi32>
    %138 = arith.andi %133, %137 : vector<1x256xi1>
    %cst_66 = arith.constant 0.000000e+00 : f32
    %139 = vector.broadcast %cst_66 : f32 to vector<1x256xf32>
    %140 = arith.select %138, %129, %139 : vector<1x256xi1>, vector<1x256xf32>
    %141 = arith.addf %123, %140 : vector<1x256xf32>
    %c0_67 = arith.constant 0 : index
    %c128_68 = arith.constant 128 : index
    %142 = vector.load %arg9[%c0_67, %c128_68] : memref<14x512xf32, #tpu.memory_space<vmem>>, vector<14x256xf32>
    %c0_69 = arith.constant 0 : index
    %c3 = arith.constant 3 : index
    %143 = vector.load %arg7[%c0_69, %c3] : memref<14x7xf32, #tpu.memory_space<vmem>>, vector<14x1xf32>
    %144 = vector.broadcast %143 : vector<14x1xf32> to vector<14x256xf32>
    %145 = arith.mulf %142, %144 : vector<14x256xf32>
    %cst_70 = arith.constant dense<0.000000e+00> : vector<256xf32>
    %146 = vector.multi_reduction <add>, %145, %cst_70 [0] : vector<14x256xf32> to vector<256xf32>
    %147 = vector.shape_cast %146 : vector<256xf32> to vector<1x256xf32>
    %c0_i32_71 = arith.constant 0 : i32
    %148 = vector.broadcast %c0_i32_71 : i32 to vector<1x256xi32>
    %149 = arith.addi %86, %148 : vector<1x256xi32>
    %c0_i32_72 = arith.constant 0 : i32
    %150 = vector.broadcast %c0_i32_72 : i32 to vector<1x256xi32>
    %151 = arith.cmpi sge, %149, %150 : vector<1x256xi32>
    %c0_i32_73 = arith.constant 0 : i32
    %152 = vector.broadcast %c0_i32_73 : i32 to vector<1x256xi32>
    %153 = arith.addi %86, %152 : vector<1x256xi32>
    %c16_i32_74 = arith.constant 16 : i32
    %154 = vector.broadcast %c16_i32_74 : i32 to vector<1x256xi32>
    %155 = arith.cmpi slt, %153, %154 : vector<1x256xi32>
    %156 = arith.andi %151, %155 : vector<1x256xi1>
    %cst_75 = arith.constant 0.000000e+00 : f32
    %157 = vector.broadcast %cst_75 : f32 to vector<1x256xf32>
    %158 = arith.select %156, %147, %157 : vector<1x256xi1>, vector<1x256xf32>
    %159 = arith.addf %141, %158 : vector<1x256xf32>
    %c0_76 = arith.constant 0 : index
    %c129 = arith.constant 129 : index
    %160 = vector.load %arg9[%c0_76, %c129] : memref<14x512xf32, #tpu.memory_space<vmem>>, vector<14x256xf32>
    %c0_77 = arith.constant 0 : index
    %c4_78 = arith.constant 4 : index
    %161 = vector.load %arg7[%c0_77, %c4_78] : memref<14x7xf32, #tpu.memory_space<vmem>>, vector<14x1xf32>
    %162 = vector.broadcast %161 : vector<14x1xf32> to vector<14x256xf32>
    %163 = arith.mulf %160, %162 : vector<14x256xf32>
    %cst_79 = arith.constant dense<0.000000e+00> : vector<256xf32>
    %164 = vector.multi_reduction <add>, %163, %cst_79 [0] : vector<14x256xf32> to vector<256xf32>
    %165 = vector.shape_cast %164 : vector<256xf32> to vector<1x256xf32>
    %c1_i32_80 = arith.constant 1 : i32
    %166 = vector.broadcast %c1_i32_80 : i32 to vector<1x256xi32>
    %167 = arith.addi %86, %166 : vector<1x256xi32>
    %c0_i32_81 = arith.constant 0 : i32
    %168 = vector.broadcast %c0_i32_81 : i32 to vector<1x256xi32>
    %169 = arith.cmpi sge, %167, %168 : vector<1x256xi32>
    %c1_i32_82 = arith.constant 1 : i32
    %170 = vector.broadcast %c1_i32_82 : i32 to vector<1x256xi32>
    %171 = arith.addi %86, %170 : vector<1x256xi32>
    %c16_i32_83 = arith.constant 16 : i32
    %172 = vector.broadcast %c16_i32_83 : i32 to vector<1x256xi32>
    %173 = arith.cmpi slt, %171, %172 : vector<1x256xi32>
    %174 = arith.andi %169, %173 : vector<1x256xi1>
    %cst_84 = arith.constant 0.000000e+00 : f32
    %175 = vector.broadcast %cst_84 : f32 to vector<1x256xf32>
    %176 = arith.select %174, %165, %175 : vector<1x256xi1>, vector<1x256xf32>
    %177 = arith.addf %159, %176 : vector<1x256xf32>
    %c0_85 = arith.constant 0 : index
    %c130 = arith.constant 130 : index
    %178 = vector.load %arg9[%c0_85, %c130] : memref<14x512xf32, #tpu.memory_space<vmem>>, vector<14x256xf32>
    %c0_86 = arith.constant 0 : index
    %c5 = arith.constant 5 : index
    %179 = vector.load %arg7[%c0_86, %c5] : memref<14x7xf32, #tpu.memory_space<vmem>>, vector<14x1xf32>
    %180 = vector.broadcast %179 : vector<14x1xf32> to vector<14x256xf32>
    %181 = arith.mulf %178, %180 : vector<14x256xf32>
    %cst_87 = arith.constant dense<0.000000e+00> : vector<256xf32>
    %182 = vector.multi_reduction <add>, %181, %cst_87 [0] : vector<14x256xf32> to vector<256xf32>
    %183 = vector.shape_cast %182 : vector<256xf32> to vector<1x256xf32>
    %c2_i32 = arith.constant 2 : i32
    %184 = vector.broadcast %c2_i32 : i32 to vector<1x256xi32>
    %185 = arith.addi %86, %184 : vector<1x256xi32>
    %c0_i32_88 = arith.constant 0 : i32
    %186 = vector.broadcast %c0_i32_88 : i32 to vector<1x256xi32>
    %187 = arith.cmpi sge, %185, %186 : vector<1x256xi32>
    %c2_i32_89 = arith.constant 2 : i32
    %188 = vector.broadcast %c2_i32_89 : i32 to vector<1x256xi32>
    %189 = arith.addi %86, %188 : vector<1x256xi32>
    %c16_i32_90 = arith.constant 16 : i32
    %190 = vector.broadcast %c16_i32_90 : i32 to vector<1x256xi32>
    %191 = arith.cmpi slt, %189, %190 : vector<1x256xi32>
    %192 = arith.andi %187, %191 : vector<1x256xi1>
    %cst_91 = arith.constant 0.000000e+00 : f32
    %193 = vector.broadcast %cst_91 : f32 to vector<1x256xf32>
    %194 = arith.select %192, %183, %193 : vector<1x256xi1>, vector<1x256xf32>
    %195 = arith.addf %177, %194 : vector<1x256xf32>
    %c0_92 = arith.constant 0 : index
    %c131 = arith.constant 131 : index
    %196 = vector.load %arg9[%c0_92, %c131] : memref<14x512xf32, #tpu.memory_space<vmem>>, vector<14x256xf32>
    %c0_93 = arith.constant 0 : index
    %c6_94 = arith.constant 6 : index
    %197 = vector.load %arg7[%c0_93, %c6_94] : memref<14x7xf32, #tpu.memory_space<vmem>>, vector<14x1xf32>
    %198 = vector.broadcast %197 : vector<14x1xf32> to vector<14x256xf32>
    %199 = arith.mulf %196, %198 : vector<14x256xf32>
    %cst_95 = arith.constant dense<0.000000e+00> : vector<256xf32>
    %200 = vector.multi_reduction <add>, %199, %cst_95 [0] : vector<14x256xf32> to vector<256xf32>
    %201 = vector.shape_cast %200 : vector<256xf32> to vector<1x256xf32>
    %c3_i32 = arith.constant 3 : i32
    %202 = vector.broadcast %c3_i32 : i32 to vector<1x256xi32>
    %203 = arith.addi %86, %202 : vector<1x256xi32>
    %c0_i32_96 = arith.constant 0 : i32
    %204 = vector.broadcast %c0_i32_96 : i32 to vector<1x256xi32>
    %205 = arith.cmpi sge, %203, %204 : vector<1x256xi32>
    %c3_i32_97 = arith.constant 3 : i32
    %206 = vector.broadcast %c3_i32_97 : i32 to vector<1x256xi32>
    %207 = arith.addi %86, %206 : vector<1x256xi32>
    %c16_i32_98 = arith.constant 16 : i32
    %208 = vector.broadcast %c16_i32_98 : i32 to vector<1x256xi32>
    %209 = arith.cmpi slt, %207, %208 : vector<1x256xi32>
    %210 = arith.andi %205, %209 : vector<1x256xi1>
    %cst_99 = arith.constant 0.000000e+00 : f32
    %211 = vector.broadcast %cst_99 : f32 to vector<1x256xf32>
    %212 = arith.select %210, %201, %211 : vector<1x256xi1>, vector<1x256xf32>
    %213 = arith.addf %195, %212 : vector<1x256xf32>
    %c0_100 = arith.constant 0 : index
    %c0_101 = arith.constant 0 : index
    %c0_102 = arith.constant 0 : index
    %214 = vector.load %arg8[%c0_100, %c0_101, %c0_102] : memref<1x32x256xf32, #tpu.memory_space<vmem>>, vector<1x32x256xf32>
    %215 = vector.shape_cast %214 : vector<1x32x256xf32> to vector<32x256xf32>
    %216 = arith.negf %213 : vector<1x256xf32>
    %217 = math.exp %216 : vector<1x256xf32>
    %cst_103 = arith.constant 1.000000e+00 : f32
    %218 = vector.broadcast %cst_103 : f32 to vector<1x256xf32>
    %219 = arith.addf %218, %217 : vector<1x256xf32>
    %220 = arith.divf %218, %219 : vector<1x256xf32>
    %221 = vector.broadcast %220 : vector<1x256xf32> to vector<32x256xf32>
    %222 = arith.mulf %215, %221 : vector<32x256xf32>
    %c0_104 = arith.constant 0 : index
    %c0_105 = arith.constant 0 : index
    %c0_106 = arith.constant 0 : index
    %223 = vector.load %arg8[%c0_104, %c0_105, %c0_106] : memref<1x32x256xf32, #tpu.memory_space<vmem>>, vector<1x32x256xf32>
    %224 = vector.shape_cast %223 : vector<1x32x256xf32> to vector<32x256xf32>
    %225 = vector.shape_cast %222 : vector<32x256xf32> to vector<1x32x256xf32>
    tpu.vector_store %arg8[%c0_104, %c0_105, %c0_106], %225 {strides = array<i32>} : memref<1x32x256xf32, #tpu.memory_space<vmem>>, vector<1x32x256xf32>,
    return
  }
  func.func @transform_0(%arg0: i32) -> i32 {
    %c0_i32 = arith.constant 0 : i32
    %c0_i32_0 = arith.constant 0 : i32
    return %c0_i32 : i32
  }
  func.func @transform_1(%arg0: i32) -> (i32, i32, i32) {
    %c0_i32 = arith.constant 0 : i32
    %c0_i32_0 = arith.constant 0 : i32
    %c0_i32_1 = arith.constant 0 : i32
    return %arg0, %c0_i32, %c0_i32_0 : i32, i32, i32
  }
  func.func @transform_2(%arg0: i32) -> (i32, i32) {
    %c0_i32 = arith.constant 0 : i32
    %c0_i32_0 = arith.constant 0 : i32
    %c0_i32_1 = arith.constant 0 : i32
    return %c0_i32, %c0_i32_0 : i32, i32
  }
  func.func @transform_3(%arg0: i32) -> (i32, i32) {
    %c0_i32 = arith.constant 0 : i32
    %c0_i32_0 = arith.constant 0 : i32
    %c0_i32_1 = arith.constant 0 : i32
    return %c0_i32, %c0_i32_0 : i32, i32
  }
  func.func @transform_4(%arg0: i32) -> (i32, i32) {
    %c0_i32 = arith.constant 0 : i32
    %c0_i32_0 = arith.constant 0 : i32
    %c0_i32_1 = arith.constant 0 : i32
    return %c0_i32, %c0_i32_0 : i32, i32
  }
  func.func @transform_5(%arg0: i32) -> (i32, i32) {
    %c0_i32 = arith.constant 0 : i32
    %c0_i32_0 = arith.constant 0 : i32
    %c0_i32_1 = arith.constant 0 : i32
    return %c0_i32, %c0_i32_0 : i32, i32
  }
  func.func @transform_6(%arg0: i32) -> (i32, i32) {
    %c0_i32 = arith.constant 0 : i32
    %c0_i32_0 = arith.constant 0 : i32
    %c0_i32_1 = arith.constant 0 : i32
    return %c0_i32, %c0_i32_0 : i32, i32
  }
  func.func @transform_7(%arg0: i32) -> (i32, i32, i32) {
    %c0_i32 = arith.constant 0 : i32
    %c0_i32_0 = arith.constant 0 : i32
    %c0_i32_1 = arith.constant 0 : i32
    return %arg0, %c0_i32, %c0_i32_0 : i32, i32, i32
  }
}

</mosaic_0001>

<llo_original>
// kernel: cbam_forward.1
$region0: #{cbam_forward.1}
  #allocation0 [shape = 'u32[]', space=smem, size = 0x4, offset = 0x4, fixed_abs, tag = 'smem constant byte address 0x4 - core index']
  #allocation1 [shape = 'u32[144,128]{1,0:T(1,128)}', space=vmem, size = 0x12000, scoped, tag = 'internal scratch']
  #allocation2 [shape = 'f32[14,512]{1,0:T(8,128)}', space=vmem, size = 0x8000, scoped, tag = 'scratch operand']
  #allocation3 [shape = 'f32[1]{0:T(128)S(6)}', space=smem, size = 0x200, scoped, tag = 'scoped memory for cbam_forward.1']
  %s0 = inlined_call_operand.<no memory space> [shape: f32[1], index: 0, kind: input, shape index: {}]
  %s1 = inlined_call_operand.vmem [shape: f32[2,32,256], index: 1, kind: input, shape index: {}]
  %s2 = inlined_call_operand.vmem [shape: f32[32,2], index: 2, kind: input, shape index: {}]
  %s3 = inlined_call_operand.vmem [shape: f32[1,2], index: 3, kind: input, shape index: {}]
  %s4 = inlined_call_operand.vmem [shape: f32[32,2], index: 4, kind: input, shape index: {}]
  %s5 = inlined_call_operand.vmem [shape: f32[32,1], index: 5, kind: input, shape index: {}]
  %s6 = inlined_call_operand.vmem [shape: f32[14,7], index: 6, kind: input, shape index: {}]
  %s7 = inlined_call_operand.vmem [shape: f32[2,32,256], index: 7, kind: output, shape index: {}]
  %s8 = sld [smem:[#allocation0]]
  $region61: #{cbam_forward.1} parent=0
    _
  %s10 = ssub.s32 1, %s8
  %s11 = scalar_select 0, %s10, %s8
  %12 = sst [smem:[#allocation3]] %s0
  loop: start=0, step=1, limit=4
  $region2: #{cbam_forward.1} parent=0 // loop_pre_header
    _
  $region3: #{cbam_forward.1} parent=0 // loop_header
    %s14 = sphi 0, %s18
    %p15 = scmp.ge.s32.totalorder %s14, 4
    %s22 = sphi 0, %s22
    %s24 = sphi 0, %s22
    %s25 = sphi 0, %s24
    %s39 = sphi 0, %s25
    %s45 = sphi 0, %s47
    %s48 = sphi 0, %s45
    %s49 = sphi 0, %s48
    %s65 = sphi 0, %s49
    %s69 = sphi 0, %s69
    %s71 = sphi 0, %s69
    %s72 = sphi 0, %s71
    %s86 = sphi 0, %s72
    %s90 = sphi 0, %s90
    %s92 = sphi 0, %s90
    %s93 = sphi 0, %s92
    %s107 = sphi 0, %s93
    %s111 = sphi 0, %s111
    %s113 = sphi 0, %s111
    %s114 = sphi 0, %s113
    %s128 = sphi 0, %s114
    %s132 = sphi 0, %s132
    %s134 = sphi 0, %s132
    %s135 = sphi 0, %s134
    %s149 = sphi 0, %s135
    %s153 = sphi 0, %s153
    %s155 = sphi 0, %s153
    %s156 = sphi 0, %s155
    %s170 = sphi 0, %s156
    %s176 = sphi 0, %s178
    %s179 = sphi 0, %s176
    %s180 = sphi 0, %s179
    %s196 = sphi 0, %s180
  $region4: #{cbam_forward.1} parent=0 // loop_header_branch
    %17 = sbr.rel (%p15) target = $region8
  $region5: #{cbam_forward.1} parent=0 // loop_body
    %s19 = ssub.s32 %s14, 1
    %s20 = ssub.s32 %s14, 2
    %s21 = sadd.s32 %s14, 1
    %s23 = sadd.s32 %s22, 1
    %p26 = scmp.eq.s32.totalorder %s14, 1
    %p27 = scmp.ne.s32.totalorder %s22, %s24
    %p28 = scmp.eq.s32.totalorder %s14, 0
    %p29 = por %p27, %p28
    %p30 = scmp.ne.s32.totalorder %s22, %s24
    %p31 = scmp.eq.s32.totalorder %s19, 1
    %p32 = por %p30, %p31
    %p33 = scmp.ne.s32.totalorder %s24, %s25
    %p34 = scmp.eq.s32.totalorder %s19, 0
    %p35 = por %p33, %p34
    %p36 = scmp.ne.s32.totalorder %s24, %s25
    %p37 = scmp.eq.s32.totalorder %s20, 1
    %p38 = por %p36, %p37
    %p40 = scmp.ne.s32.totalorder %s25, %s39
    %p41 = scmp.eq.s32.totalorder %s20, 0
    %p42 = por %p40, %p41
    %s43 = ssub.s32 %s14, %s21
    %p44 = scmp.eq.s32.totalorder %s43, 0
    %s46 = sadd.s32 %s45, 1
    %s47 = scalar_select %p44, %s45, %s46
    %p50 = pneg %p44
    %p51 = scmp.eq.s32.totalorder %s14, 1
    %p52 = por %p50, %p51
    %p53 = scmp.ne.s32.totalorder %s45, %s48
    %p54 = scmp.eq.s32.totalorder %s14, 0
    %p55 = por %p53, %p54
    %p56 = scmp.ne.s32.totalorder %s45, %s48
    %p57 = scmp.eq.s32.totalorder %s19, 1
    %p58 = por %p56, %p57
    %p59 = scmp.ne.s32.totalorder %s48, %s49
    %p60 = scmp.eq.s32.totalorder %s19, 0
    %p61 = por %p59, %p60
    %p62 = scmp.ne.s32.totalorder %s48, %s49
    %p63 = scmp.eq.s32.totalorder %s20, 1
    %p64 = por %p62, %p63
    %p66 = scmp.ne.s32.totalorder %s49, %s65
    %p67 = scmp.eq.s32.totalorder %s20, 0
    %p68 = por %p66, %p67
    %s70 = sadd.s32 %s69, 1
    %p73 = scmp.eq.s32.totalorder %s14, 1
    %p74 = scmp.ne.s32.totalorder %s69, %s71
    %p75 = scmp.eq.s32.totalorder %s14, 0
    %p76 = por %p74, %p75
    %p77 = scmp.ne.s32.totalorder %s69, %s71
    %p78 = scmp.eq.s32.totalorder %s19, 1
    %p79 = por %p77, %p78
    %p80 = scmp.ne.s32.totalorder %s71, %s72
    %p81 = scmp.eq.s32.totalorder %s19, 0
    %p82 = por %p80, %p81
    %p83 = scmp.ne.s32.totalorder %s71, %s72
    %p84 = scmp.eq.s32.totalorder %s20, 1
    %p85 = por %p83, %p84
    %p87 = scmp.ne.s32.totalorder %s72, %s86
    %p88 = scmp.eq.s32.totalorder %s20, 0
    %p89 = por %p87, %p88
    %s91 = sadd.s32 %s90, 1
    %p94 = scmp.eq.s32.totalorder %s14, 1
    %p95 = scmp.ne.s32.totalorder %s90, %s92
    %p96 = scmp.eq.s32.totalorder %s14, 0
    %p97 = por %p95, %p96
    %p98 = scmp.ne.s32.totalorder %s90, %s92
    %p99 = scmp.eq.s32.totalorder %s19, 1
    %p100 = por %p98, %p99
    %p101 = scmp.ne.s32.totalorder %s92, %s93
    %p102 = scmp.eq.s32.totalorder %s19, 0
    %p103 = por %p101, %p102
    %p104 = scmp.ne.s32.totalorder %s92, %s93
    %p105 = scmp.eq.s32.totalorder %s20, 1
    %p106 = por %p104, %p105
    %p108 = scmp.ne.s32.totalorder %s93, %s107
    %p109 = scmp.eq.s32.totalorder %s20, 0
    %p110 = por %p108, %p109
    %s112 = sadd.s32 %s111, 1
    %p115 = scmp.eq.s32.totalorder %s14, 1
    %p116 = scmp.ne.s32.totalorder %s111, %s113
    %p117 = scmp.eq.s32.totalorder %s14, 0
    %p118 = por %p116, %p117
    %p119 = scmp.ne.s32.totalorder %s111, %s113
    %p120 = scmp.eq.s32.totalorder %s19, 1
    %p121 = por %p119, %p120
    %p122 = scmp.ne.s32.totalorder %s113, %s114
    %p123 = scmp.eq.s32.totalorder %s19, 0
    %p124 = por %p122, %p123
    %p125 = scmp.ne.s32.totalorder %s113, %s114
    %p126 = scmp.eq.s32.totalorder %s20, 1
    %p127 = por %p125, %p126
    %p129 = scmp.ne.s32.totalorder %s114, %s128
    %p130 = scmp.eq.s32.totalorder %s20, 0
    %p131 = por %p129, %p130
    %s133 = sadd.s32 %s132, 1
    %p136 = scmp.eq.s32.totalorder %s14, 1
    %p137 = scmp.ne.s32.totalorder %s132, %s134
    %p138 = scmp.eq.s32.totalorder %s14, 0
    %p139 = por %p137, %p138
    %p140 = scmp.ne.s32.totalorder %s132, %s134
    %p141 = scmp.eq.s32.totalorder %s19, 1
    %p142 = por %p140, %p141
    %p143 = scmp.ne.s32.totalorder %s134, %s135
    %p144 = scmp.eq.s32.totalorder %s19, 0
    %p145 = por %p143, %p144
    %p146 = scmp.ne.s32.totalorder %s134, %s135
    %p147 = scmp.eq.s32.totalorder %s20, 1
    %p148 = por %p146, %p147
    %p150 = scmp.ne.s32.totalorder %s135, %s149
    %p151 = scmp.eq.s32.totalorder %s20, 0
    %p152 = por %p150, %p151
    %s154 = sadd.s32 %s153, 1
    %p157 = scmp.eq.s32.totalorder %s14, 1
    %p158 = scmp.ne.s32.totalorder %s153, %s155
    %p159 = scmp.eq.s32.totalorder %s14, 0
    %p160 = por %p158, %p159
    %p161 = scmp.ne.s32.totalorder %s153, %s155
    %p162 = scmp.eq.s32.totalorder %s19, 1
    %p163 = por %p161, %p162
    %p164 = scmp.ne.s32.totalorder %s155, %s156
    %p165 = scmp.eq.s32.totalorder %s19, 0
    %p166 = por %p164, %p165
    %p167 = scmp.ne.s32.totalorder %s155, %s156
    %p168 = scmp.eq.s32.totalorder %s20, 1
    %p169 = por %p167, %p168
    %p171 = scmp.ne.s32.totalorder %s156, %s170
    %p172 = scmp.eq.s32.totalorder %s20, 0
    %p173 = por %p171, %p172
    %s174 = ssub.s32 %s14, %s21
    %p175 = scmp.eq.s32.totalorder %s174, 0
    %s177 = sadd.s32 %s176, 1
    %s178 = scalar_select %p175, %s176, %s177
    %p181 = pneg %p175
    %p182 = scmp.eq.s32.totalorder %s14, 1
    %p183 = por %p181, %p182
    %p184 = scmp.ne.s32.totalorder %s176, %s179
    %p185 = scmp.eq.s32.totalorder %s14, 0
    %p186 = por %p184, %p185
    %p187 = scmp.ne.s32.totalorder %s176, %s179
    %p188 = scmp.eq.s32.totalorder %s19, 1
    %p189 = por %p187, %p188
    %p190 = scmp.ne.s32.totalorder %s179, %s180
    %p191 = scmp.eq.s32.totalorder %s19, 0
    %p192 = por %p190, %p191
    %p193 = scmp.ne.s32.totalorder %s179, %s180
    %p194 = scmp.eq.s32.totalorder %s20, 1
    %p195 = por %p193, %p194
    %p197 = scmp.ne.s32.totalorder %s180, %s196
    %p198 = scmp.eq.s32.totalorder %s20, 0
    %p199 = por %p197, %p198
    %p200 = scmp.le.s32.totalorder 1, %s14
    %p201 = scmp.lt.s32.totalorder %s14, 3
    %p202 = pnand %p200, %p201
    %p203 = pneg %p202
    // Predicated region
    $region9: #{cbam_forward.1} parent=5 // pred_check
      _
    $region10: #{cbam_forward.1} parent=5 // pred_check_branch
      %205 = sbr.rel (%p202) target = $region12
    $region11: #{cbam_forward.1} parent=5 // pred_region
      %s206 = ssub.s32 %s14, 1
      // Predicated region
      $region13: #{cbam_forward.1} parent=11 // pred_check
        %p207 = pneg %p35
      $region14: #{cbam_forward.1} parent=11 // pred_check_branch
        %209 = sbr.rel (%p207) target = $region16
      $region15: #{cbam_forward.1} parent=11 // pred_region
        _
      $region16: #{cbam_forward.1} parent=11 // pred_fallthru
        _
      // Predicated region
      $region17: #{cbam_forward.1} parent=11 // pred_check
        %p210 = pneg %p82
      $region18: #{cbam_forward.1} parent=11 // pred_check_branch
        %212 = sbr.rel (%p210) target = $region20
      $region19: #{cbam_forward.1} parent=11 // pred_region
        _
      $region20: #{cbam_forward.1} parent=11 // pred_fallthru
        _
      // Predicated region
      $region21: #{cbam_forward.1} parent=11 // pred_check
        %p213 = pneg %p103
      $region22: #{cbam_forward.1} parent=11 // pred_check_branch
        %215 = sbr.rel (%p213) target = $region24
      $region23: #{cbam_forward.1} parent=11 // pred_region
        _
      $region24: #{cbam_forward.1} parent=11 // pred_fallthru
        _
      // Predicated region
      $region25: #{cbam_forward.1} parent=11 // pred_check
        %p216 = pneg %p124
      $region26: #{cbam_forward.1} parent=11 // pred_check_branch
        %218 = sbr.rel (%p216) target = $region28
      $region27: #{cbam_forward.1} parent=11 // pred_region
        _
      $region28: #{cbam_forward.1} parent=11 // pred_fallthru
        _
      // Predicated region
      $region29: #{cbam_forward.1} parent=11 // pred_check
        %p219 = pneg %p145
      $region30: #{cbam_forward.1} parent=11 // pred_check_branch
        %221 = sbr.rel (%p219) target = $region32
      $region31: #{cbam_forward.1} parent=11 // pred_region
        _
      $region32: #{cbam_forward.1} parent=11 // pred_fallthru
        _
      // Predicated region
      $region33: #{cbam_forward.1} parent=11 // pred_check
        %p222 = pneg %p166
      $region34: #{cbam_forward.1} parent=11 // pred_check_branch
        %224 = sbr.rel (%p222) target = $region36
      $region35: #{cbam_forward.1} parent=11 // pred_region
        _
      $region36: #{cbam_forward.1} parent=11 // pred_fallthru
        _
    $region12: #{cbam_forward.1} parent=5 // pred_fallthru
      _
    %p225 = scmp.lt.s32.totalorder %s14, 2
    // Predicated region
    $region37: #{cbam_forward.1} parent=5 // pred_check
      %p226 = pneg %p225
    $region38: #{cbam_forward.1} parent=5 // pred_check_branch
      %228 = sbr.rel (%p226) target = $region40
    $region39: #{cbam_forward.1} parent=5 // pred_region
      // Predicated region
      $region41: #{cbam_forward.1} parent=39 // pred_check
        %p229 = pneg %p55
      $region42: #{cbam_forward.1} parent=39 // pred_check_branch
        %231 = sbr.rel (%p229) target = $region44
      $region43: #{cbam_forward.1} parent=39 // pred_region
        %p232 = scmp.lt.s32.totalorder %s14, 1
        %s233 = scalar_select %p232, %s14, 1
        %s234 = smul.addr %s233, 8
        %s235 = smul.addr %s234, 8
        %s236 = scalar_lea.vmem %s1, %s235
      $region44: #{cbam_forward.1} parent=39 // pred_fallthru
        _
    $region40: #{cbam_forward.1} parent=5 // pred_fallthru
      _
    %p237 = scmp.le.s32.totalorder 1, %s14
    %p238 = scmp.lt.s32.totalorder %s14, 3
    %p239 = pnand %p237, %p238
    %p240 = pneg %p239
    // Predicated region
    $region45: #{cbam_forward.1} parent=5 // pred_check
      _
    $region46: #{cbam_forward.1} parent=5 // pred_check_branch
      %242 = sbr.rel (%p239) target = $region48
    $region47: #{cbam_forward.1} parent=5 // pred_region
      %s243 = ssub.s32 %s14, 1
      %p244 = pneg %p35
      %p245 = pneg %p32
      %p246 = scmp.lt.s32.totalorder %s19, 1
      %s247 = scalar_select %p246, %s19, 1
      %s248 = smul.addr %s247, 8
      %s249 = smul.addr %s248, 8
      %s250 = scalar_lea.vmem %s1, %s249
      %p251 = pneg %p61
      %p252 = pneg %p58
      %p253 = pneg %p82
      %p254 = pneg %p79
      %p255 = pneg %p103
      %p256 = pneg %p100
      %p257 = pneg %p124
      %p258 = pneg %p121
      %p259 = pneg %p145
      %p260 = pneg %p142
      %p261 = pneg %p166
      %p262 = pneg %p163
      %p263 = pneg %p192
      %p264 = pneg %p189
      %p265 = scmp.lt.s32.totalorder %s19, 1
      %s266 = scalar_select %p265, %s19, 1
      %s267 = smul.addr %s266, 8
      %s268 = smul.addr %s267, 8
      %s269 = scalar_lea.vmem %s7, %s268
      %p270 = scmp.lt.s32.totalorder %s19, 1
      %s271 = scalar_select %p270, %s19, 1
      %s272 = smul.addr %s271, 8
      %s273 = smul.addr %s272, 8
      %s274 = scalar_lea.vmem %s1, %s273
      %p275 = scmp.lt.s32.totalorder %s19, 1
      %s276 = scalar_select %p275, %s19, 1
      %s277 = smul.addr %s276, 8
      %s278 = smul.addr %s277, 8
      %s279 = scalar_lea.vmem %s7, %s278
      %v280 = vld [vmem:[%s274] sm:$0xff]
      %v281 = vld [vmem:[%s274 + $0x8] sm:$0xff]
      %v282 = vld [vmem:[%s274 + $0x10] sm:$0xff]
      %v283 = vld [vmem:[%s274 + $0x18] sm:$0xff]
      %v284 = vld [vmem:[%s274 + $0x20] sm:$0xff]
      %v285 = vld [vmem:[%s274 + $0x28] sm:$0xff]
      %v286 = vld [vmem:[%s274 + $0x30] sm:$0xff]
      %v287 = vld [vmem:[%s274 + $0x38] sm:$0xff]
      %v288 = vadd.f32 %v280, %v281
      %289 = vadd.xlane.f32.xlu0 %v288
      %v290 = vpop.xlane.xlu0 %289
      %v291 = vadd.f32 %v282, %v283
      %292 = vadd.xlane.f32.xlu0 %v291
      %v293 = vpop.xlane.xlu0 %292
      %v294 = vadd.f32 %v284, %v285
      %295 = vadd.xlane.f32.xlu0 %v294
      %v296 = vpop.xlane.xlu0 %295
      %v297 = vadd.f32 %v286, %v287
      %298 = vadd.xlane.f32.xlu0 %v297
      %v299 = vpop.xlane.xlu0 %298
      %v300 = vmul.f32 %v290, 0.00390625
      %v301 = vmul.f32 %v293, 0.00390625
      %v302 = vmul.f32 %v296, 0.00390625
      %v303 = vmul.f32 %v299, 0.00390625
      %v304 = vmax.f32 %v280, %v281
      %305 = vmax.xlane.f32.xlu0 %v304
      %v306 = vpop.xlane.xlu0 %305
      %v307 = vmax.f32 %v282, %v283
      %308 = vmax.xlane.f32.xlu0 %v307
      %v309 = vpop.xlane.xlu0 %308
      %v310 = vmax.f32 %v284, %v285
      %311 = vmax.xlane.f32.xlu0 %v310
      %v312 = vpop.xlane.xlu0 %311
      %v313 = vmax.f32 %v286, %v287
      %314 = vmax.xlane.f32.xlu0 %v313
      %v315 = vpop.xlane.xlu0 %314
      %v316 = vld [vmem:[%s2] sm:$0xff]
      %v317 = vld [vmem:[%s2 + $0x8] sm:$0xff]
      %v318 = vld [vmem:[%s2 + $0x10] sm:$0xff]
      %v319 = vld [vmem:[%s2 + $0x18] sm:$0xff]
      %v320 = vmul.f32 %v300, %v316
      %v321 = vmul.f32 %v301, %v317
      %v322 = vmul.f32 %v302, %v318
      %v323 = vmul.f32 %v303, %v319
      %vm324 = vcmask 15360
      %v325 = vsel %vm324, %v320, 0.0
      %v326 = vsel %vm324, %v321, 0.0
      %v327 = vadd.f32 %v325, %v326
      %v328 = vsel %vm324, %v322, 0.0
      %v329 = vadd.f32 %v327, %v328
      %v330 = vsel %vm324, %v323, 0.0
      %v331 = vadd.f32 %v329, %v330
      %v332 = vrot.slane %v331, 4
      %v333 = vadd.f32 %v331, %v332
      %v334 = vrot.slane %v333, 2
      %v335 = vadd.f32 %v333, %v334
      %v336 = vrot.slane %v335, 1
      %v337 = vadd.f32 %v335, %v336
      %v338 = vld [vmem:[%s3] sm:$0x1]
      %v339 = vadd.f32 %v337, %v338
      %v340 = vmax.f32 %v339, 0.0
      %v341 = vld [vmem:[%s4] sm:$0xff]
      %v342 = vld [vmem:[%s4 + $0x8] sm:$0xff]
      %v343 = vld [vmem:[%s4 + $0x10] sm:$0xff]
      %v344 = vld [vmem:[%s4 + $0x18] sm:$0xff]
      %v345 = vlaneseq
      %v346 = vshrl.u32 %v345, 7
      %v347 = vsub.s32 0, %v346
      %v348 = vrot.slane %v340, %v347
      %v349 = vmul.f32 %v348, %v341
      %v350 = vmul.f32 %v348, %v342
      %v351 = vmul.f32 %v348, %v343
      %v352 = vmul.f32 %v348, %v344
      %v353 = vsel %vm324, %v349, 0.0
      %354 = vadd.xlane.f32.xlu0 %v353
      %v355 = vpop.xlane.xlu0 %354
      %v356 = vsel %vm324, %v350, 0.0
      %357 = vadd.xlane.f32.xlu0 %v356
      %v358 = vpop.xlane.xlu0 %357
      %v359 = vsel %vm324, %v351, 0.0
      %360 = vadd.xlane.f32.xlu0 %v359
      %v361 = vpop.xlane.xlu0 %360
      %v362 = vsel %vm324, %v352, 0.0
      %363 = vadd.xlane.f32.xlu0 %v362
      %v364 = vpop.xlane.xlu0 %363
      %v365 = vld [vmem:[%s5] sm:$0xff]
      %v366 = vld [vmem:[%s5 + $0x8] sm:$0xff]
      %v367 = vld [vmem:[%s5 + $0x10] sm:$0xff]
      %v368 = vld [vmem:[%s5 + $0x18] sm:$0xff]
      %v369 = vadd.f32 %v355, %v365
      %v370 = vadd.f32 %v358, %v366
      %v371 = vadd.f32 %v361, %v367
      %v372 = vadd.f32 %v364, %v368
      %v373 = vmul.f32 %v306, %v316
      %v374 = vmul.f32 %v309, %v317
      %v375 = vmul.f32 %v312, %v318
      %v376 = vmul.f32 %v315, %v319
      %v377 = vsel %vm324, %v373, 0.0
      %v378 = vsel %vm324, %v374, 0.0
      %v379 = vadd.f32 %v377, %v378
      %v380 = vsel %vm324, %v375, 0.0
      %v381 = vadd.f32 %v379, %v380
      %v382 = vsel %vm324, %v376, 0.0
      %v383 = vadd.f32 %v381, %v382
      %v384 = vrot.slane %v383, 4
      %v385 = vadd.f32 %v383, %v384
      %v386 = vrot.slane %v385, 2
      %v387 = vadd.f32 %v385, %v386
      %v388 = vrot.slane %v387, 1
      %v389 = vadd.f32 %v387, %v388
      %v390 = vadd.f32 %v389, %v338
      %v391 = vmax.f32 %v390, 0.0
      %v392 = vlaneseq
      %v393 = vshrl.u32 %v392, 7
      %v394 = vsub.s32 0, %v393
      %v395 = vrot.slane %v391, %v394
      %v396 = vmul.f32 %v395, %v341
      %v397 = vmul.f32 %v395, %v342
      %v398 = vmul.f32 %v395, %v343
      %v399 = vmul.f32 %v395, %v344
      %v400 = vsel %vm324, %v396, 0.0
      %401 = vadd.xlane.f32.xlu0 %v400
      %v402 = vpop.xlane.xlu0 %401
      %v403 = vsel %vm324, %v397, 0.0
      %404 = vadd.xlane.f32.xlu0 %v403
      %v405 = vpop.xlane.xlu0 %404
      %v406 = vsel %vm324, %v398, 0.0
      %407 = vadd.xlane.f32.xlu0 %v406
      %v408 = vpop.xlane.xlu0 %407
      %v409 = vsel %vm324, %v399, 0.0
      %410 = vadd.xlane.f32.xlu0 %v409
      %v411 = vpop.xlane.xlu0 %410
      %v412 = vadd.f32 %v402, %v365
      %v413 = vadd.f32 %v405, %v366
      %v414 = vadd.f32 %v408, %v367
      %v415 = vadd.f32 %v411, %v368
      %v416 = vadd.f32 %v369, %v412
      %v417 = vadd.f32 %v370, %v413
      %v418 = vadd.f32 %v371, %v414
      %v419 = vadd.f32 %v372, %v415
      %v420 = vxor.u32 %v416, 2147483648
      %v421 = vxor.u32 %v417, 2147483648
      %v422 = vxor.u32 %v418, 2147483648
      %v423 = vxor.u32 %v419, 2147483648
      %v424 = vmul.f32 %v420, 1.442695
      %v425 = vpow.pop %v424
      %v426 = vmul.f32 %v421, 1.442695
      %v427 = vpow.pop %v426
      %v428 = vmul.f32 %v422, 1.442695
      %v429 = vpow.pop %v428
      %v430 = vmul.f32 %v423, 1.442695
      %v431 = vpow.pop %v430
      %v432 = vadd.f32 %v425, 1.0
      %v433 = vadd.f32 %v427, 1.0
      %v434 = vadd.f32 %v429, 1.0
      %v435 = vadd.f32 %v431, 1.0
      %v436 = vrcp.pop %v432
      %v437 = vmul.f32 1.0, %v436
      %v438 = vrcp.pop %v433
      %v439 = vmul.f32 1.0, %v438
      %v440 = vrcp.pop %v434
      %v441 = vmul.f32 1.0, %v440
      %v442 = vrcp.pop %v435
      %v443 = vmul.f32 1.0, %v442
      %445 = vset.pattern.permute.xlu0 0
      %446 = vperm.xlu0 %445, %v437
      %v447 = vpop.permute.xlu0 %446
      %450 = vset.pattern.permute.xlu0 0
      %451 = vperm.xlu0 %450, %v439
      %v452 = vpop.permute.xlu0 %451
      %455 = vset.pattern.permute.xlu0 0
      %456 = vperm.xlu0 %455, %v441
      %v457 = vpop.permute.xlu0 %456
      %460 = vset.pattern.permute.xlu0 0
      %461 = vperm.xlu0 %460, %v443
      %v462 = vpop.permute.xlu0 %461
      %v464 = vmul.f32 %v280, %v447
      %v465 = vmul.f32 %v281, %v447
      %v466 = vmul.f32 %v282, %v452
      %v467 = vmul.f32 %v283, %v452
      %v468 = vmul.f32 %v284, %v457
      %v469 = vmul.f32 %v285, %v457
      %v470 = vmul.f32 %v286, %v462
      %v471 = vmul.f32 %v287, %v462
      %472 = vst [vmem:[%s279] sm:$0xff] %v464
      %473 = vst [vmem:[%s279 + $0x8] sm:$0xff] %v465
      %474 = vst [vmem:[%s279 + $0x10] sm:$0xff] %v466
      %475 = vst [vmem:[%s279 + $0x18] sm:$0xff] %v467
      %476 = vst [vmem:[%s279 + $0x20] sm:$0xff] %v468
      %477 = vst [vmem:[%s279 + $0x28] sm:$0xff] %v469
      %478 = vst [vmem:[%s279 + $0x30] sm:$0xff] %v470
      %479 = vst [vmem:[%s279 + $0x38] sm:$0xff] %v471
      %s480 = sld [smem:[#allocation3]]
      %v481 = vld [vmem:[%s279] sm:$0xff]
      %v482 = vld [vmem:[%s279 + $0x8] sm:$0xff]
      %v483 = vld [vmem:[%s279 + $0x10] sm:$0xff]
      %v484 = vld [vmem:[%s279 + $0x18] sm:$0xff]
      %v485 = vld [vmem:[%s279 + $0x20] sm:$0xff]
      %v486 = vld [vmem:[%s279 + $0x28] sm:$0xff]
      %v487 = vld [vmem:[%s279 + $0x30] sm:$0xff]
      %v488 = vld [vmem:[%s279 + $0x38] sm:$0xff]
      %v489 = vmax.f32 %v481, %v485
      %v490 = vmax.f32 %v483, %v487
      %v491 = vmax.f32 %v489, %v490
      %v492 = vrot.slane %v491, 4
      %v493 = vmax.f32 %v491, %v492
      %v494 = vrot.slane %v493, 2
      %v495 = vmax.f32 %v493, %v494
      %v496 = vrot.slane %v495, 1
      %v497 = vmax.f32 %v495, %v496
      %v498 = vmax.f32 %v482, %v486
      %v499 = vmax.f32 %v484, %v488
      %v500 = vmax.f32 %v498, %v499
      %v501 = vrot.slane %v500, 4
      %v502 = vmax.f32 %v500, %v501
      %v503 = vrot.slane %v502, 2
      %v504 = vmax.f32 %v502, %v503
      %v505 = vrot.slane %v504, 1
      %v506 = vmax.f32 %v504, %v505
      %v507 = vadd.f32 %v481, %v483
      %v508 = vadd.f32 %v507, %v485
      %v509 = vadd.f32 %v508, %v487
      %v510 = vrot.slane %v509, 4
      %v511 = vadd.f32 %v509, %v510
      %v512 = vrot.slane %v511, 2
      %v513 = vadd.f32 %v511, %v512
      %v514 = vrot.slane %v513, 1
      %v515 = vadd.f32 %v513, %v514
      %v516 = vadd.f32 %v482, %v484
      %v517 = vadd.f32 %v516, %v486
      %v518 = vadd.f32 %v517, %v488
      %v519 = vrot.slane %v518, 4
      %v520 = vadd.f32 %v518, %v519
      %v521 = vrot.slane %v520, 2
      %v522 = vadd.f32 %v520, %v521
      %v523 = vrot.slane %v522, 1
      %v524 = vadd.f32 %v522, %v523
      %v525 = vrcp.pop 32.0
      %v526 = vmul.f32 %v515, %v525
      %v527 = vmul.f32 %v524, %v525
      %vm528 = vcmask 1040384
      %v529 = vsel %vm528, %v497, %v526
      %v530 = vsel %vm528, %v506, %v527
      %531 = vst [vmem:[#allocation2] sm:$0xff] 0.0
      %532 = vst [vmem:[#allocation2 + $0x8] sm:$0xff] 0.0
      %533 = vst [vmem:[#allocation2 + $0x10] sm:$0xff] 0.0
      %534 = vst [vmem:[#allocation2 + $0x18] sm:$0xff] 0.0
      %535 = vst [vmem:[#allocation2 + $0x20] sm:$0x3f] 0.0
      %536 = vst [vmem:[#allocation2 + $0x28] sm:$0x3f] 0.0
      %537 = vst [vmem:[#allocation2 + $0x30] sm:$0x3f] 0.0
      %538 = vst [vmem:[#allocation2 + $0x38] sm:$0x3f] 0.0
      %541 = vrot.lane.b32.xlu0 %v529, 48
      %v542 = vpop.permute.xlu0 %541
      %543 = vrot.lane.b32.xlu0 %v530, 48
      %v544 = vpop.permute.xlu0 %543
      %vm545 = vcmask 392192
      %v546 = vsel %vm545, %v542, %v544
      %vm550 = vcmask 1041792
      %551 = vst.msk [vmem:[#allocation2 + $0x8] sm:$0x3] %vm550, %v542
      %552 = vst [vmem:[#allocation2 + $0x10] sm:$0x3] %v546
      %vm553 = vcmask 386048
      %554 = vst.msk [vmem:[#allocation2 + $0x18] sm:$0x3] %vm553, %v544
      %v555 = vrot.slane %v529, 6
      %v556 = vrot.slane %v530, 6
      %557 = vrot.lane.b32.xlu0 %v555, 32
      %v558 = vpop.permute.xlu0 %557
      %559 = vrot.lane.b32.xlu0 %v556, 32
      %v560 = vpop.permute.xlu0 %559
      %vm561 = vcmask 261120
      %v562 = vsel %vm561, %v558, %v560
      %vm566 = vcmask 1043714
      %567 = vst.msk [vmem:[#allocation2 + $0x8] sm:$0xc] %vm566, %v558
      %568 = vst [vmem:[#allocation2 + $0x10] sm:$0xc] %v562
      %vm569 = vcmask 257026
      %570 = vst.msk [vmem:[#allocation2 + $0x18] sm:$0xc] %vm569, %v560
      %v571 = vrot.slane %v529, 4
      %v572 = vrot.slane %v530, 4
      %573 = vrot.lane.b32.xlu0 %v571, 16
      %v574 = vpop.permute.xlu0 %573
      %575 = vrot.lane.b32.xlu0 %v572, 16
      %v576 = vpop.permute.xlu0 %575
      %vm577 = vcmask 130048
      %v578 = vsel %vm577, %v574, %v576
      %vm582 = vcmask 1045636
      %583 = vst.msk [vmem:[#allocation2 + $0x8] sm:$0x30] %vm582, %v574
      %584 = vst [vmem:[#allocation2 + $0x10] sm:$0x30] %v578
      %vm585 = vcmask 128004
      %586 = vst.msk [vmem:[#allocation2 + $0x18] sm:$0x30] %vm585, %v576
      %v587 = vrot.slane %v529, 2
      %v588 = vrot.slane %v530, 2
      %591 = vst [vmem:[#allocation2 + $0x8] sm:$0xc0] %v587
      %592 = vst [vmem:[#allocation2 + $0x10] sm:$0xc0] %v588
      %593 = vrot.lane.b32.xlu0 %v529, 112
      %v594 = vpop.permute.xlu0 %593
      %595 = vrot.lane.b32.xlu0 %v530, 112
      %v596 = vpop.permute.xlu0 %595
      %vm597 = vcmask 916480
      %v598 = vsel %vm597, %v594, %v596
      %vm602 = vcmask 1042304
      %603 = vst.msk [vmem:[#allocation2 + $0x20] sm:$0x3] %vm602, %v594
      %604 = vst [vmem:[#allocation2 + $0x28] sm:$0x3] %v598
      %vm605 = vcmask 910336
      %606 = vst.msk [vmem:[#allocation2 + $0x30] sm:$0x3] %vm605, %v596
      %607 = vrot.lane.b32.xlu0 %v555, 96
      %v608 = vpop.permute.xlu0 %607
      %609 = vrot.lane.b32.xlu0 %v556, 96
      %v610 = vpop.permute.xlu0 %609
      %vm611 = vcmask 785408
      %v612 = vsel %vm611, %v608, %v610
      %vm616 = vcmask 1044226
      %617 = vst.msk [vmem:[#allocation2 + $0x20] sm:$0xc] %vm616, %v608
      %618 = vst [vmem:[#allocation2 + $0x28] sm:$0xc] %v612
      %vm619 = vcmask 781314
      %620 = vst.msk [vmem:[#allocation2 + $0x30] sm:$0xc] %vm619, %v610
      %621 = vrot.lane.b32.xlu0 %v571, 80
      %v622 = vpop.permute.xlu0 %621
      %623 = vrot.lane.b32.xlu0 %v572, 80
      %v624 = vpop.permute.xlu0 %623
      %vm625 = vcmask 654336
      %v626 = vsel %vm625, %v622, %v624
      %vm630 = vcmask 1046148
      %631 = vst.msk [vmem:[#allocation2 + $0x20] sm:$0x30] %vm630, %v622
      %632 = vst [vmem:[#allocation2 + $0x28] sm:$0x30] %v626
      %vm633 = vcmask 652292
      %634 = vst.msk [vmem:[#allocation2 + $0x30] sm:$0x30] %vm633, %v624
      %v635 = vlaneseq
      %v636 = vand.u32 %v635, 127
      %v637 = vadd.s32 %v636, 128
      %vm638 = vcmp.lt.s32.totalorder %v636, 0
      %v639 = vsub.s32 0, %v636
      %v640 = vsel %vm638, %v639, %v636
      %v641 = vshrl.u32 %v640, 4
      %v642 = vand.u32 %v640, 15
      %v643 = vsub.s32 0, %v642
      %v644 = vsel %vm638, %v643, %v642
      %vm645 = vcmp.lt.s32.totalorder %v637, 0
      %v646 = vsub.s32 0, %v637
      %v647 = vsel %vm645, %v646, %v637
      %v648 = vshrl.u32 %v647, 4
      %v649 = vand.u32 %v647, 15
      %v650 = vsub.s32 0, %v649
      %v651 = vsel %vm645, %v650, %v649
      %vm652 = vcmp.ne.s32.totalorder %v644, 0
      %vm653 = vcmp.ne.s32.totalorder %v651, 0
      %vm654 = vcmp.lt.s32.totalorder %v644, 0
      %vm655 = vcmp.lt.s32.totalorder %v651, 0
      %vm656 = vmand %vm654, %vm652
      %vm657 = vmand %vm655, %vm653
      %v658 = vadd.s32 %v644, 16
      %v659 = vadd.s32 %v651, 16
      %v660 = vsel %vm656, %v658, %v644
      %v661 = vsel %vm657, %v659, %v651
      %v662 = vstv %s480
      %v663 = vld [vmem:[#allocation2] sm:$0xff]
      %v664 = vld [vmem:[#allocation2 + $0x8] sm:$0xff]
      %v665 = vld [vmem:[#allocation2 + $0x10] sm:$0xff]
      %v666 = vld [vmem:[#allocation2 + $0x20] sm:$0x3f]
      %v667 = vld [vmem:[#allocation2 + $0x28] sm:$0x3f]
      %v668 = vld [vmem:[#allocation2 + $0x30] sm:$0x3f]
      %v669 = vld [vmem:[%s6] sm:$0xff]
      %v670 = vld [vmem:[%s6 + $0x8] sm:$0x3f]
      %672 = vset.pattern.permute.xlu0 0
      %673 = vperm.xlu0 %672, %v669
      %v674 = vpop.permute.xlu0 %673
      %677 = vset.pattern.permute.xlu0 0
      %678 = vperm.xlu0 %677, %v670
      %v679 = vpop.permute.xlu0 %678
      %v681 = vmul.f32 %v663, %v674
      %v682 = vmul.f32 %v664, %v674
      %v683 = vmul.f32 %v665, %v674
      %v684 = vmul.f32 %v666, %v679
      %v685 = vmul.f32 %v667, %v679
      %v686 = vmul.f32 %v668, %v679
      %vm687 = vcmask 1048552
      %v688 = vsel %vm687, %v681, 0.0
      %vm689 = vcmask 1046504
      %v690 = vsel %vm689, %v684, 0.0
      %v691 = vadd.f32 %v688, %v690
      %v692 = vrot.slane %v691, 4
      %v693 = vadd.f32 %v691, %v692
      %v694 = vrot.slane %v693, 2
      %v695 = vadd.f32 %v693, %v694
      %v696 = vrot.slane %v695, 1
      %v697 = vadd.f32 %v695, %v696
      %vm698 = vcmask 1045504
      %v699 = vsel %vm698, %v685, 0.0
      %v700 = vadd.f32 %v682, %v699
      %v701 = vrot.slane %v700, 4
      %v702 = vadd.f32 %v700, %v701
      %v703 = vrot.slane %v702, 2
      %v704 = vadd.f32 %v702, %v703
      %v705 = vrot.slane %v704, 1
      %v706 = vadd.f32 %v704, %v705
      %vm707 = vcmask 1022976
      %v708 = vsel %vm707, %v683, 0.0
      %vm709 = vcmask 1020928
      %v710 = vsel %vm709, %v686, 0.0
      %v711 = vadd.f32 %v708, %v710
      %v712 = vrot.slane %v711, 4
      %v713 = vadd.f32 %v711, %v712
      %v714 = vrot.slane %v713, 2
      %v715 = vadd.f32 %v713, %v714
      %v716 = vrot.slane %v715, 1
      %v717 = vadd.f32 %v715, %v716
      %v718 = vadd.s32 %v660, 4294967293
      %v719 = vadd.s32 %v661, 4294967293
      %vm720 = vcmp.ge.s32.totalorder %v718, 0
      %vm721 = vcmp.ge.s32.totalorder %v719, 0
      %vm722 = vcmp.lt.s32.totalorder %v718, 16
      %vm723 = vcmp.lt.s32.totalorder %v719, 16
      %vm724 = vmand %vm720, %vm722
      %vm725 = vmand %vm721, %vm723
      %729 = vrot.lane.b32.xlu0 %v697, 3
      %v730 = vpop.permute.xlu0 %729
      %731 = vrot.lane.b32.xlu0 %v706, 3
      %v732 = vpop.permute.xlu0 %731
      %733 = vrot.lane.b32.xlu0 %v717, 3
      %v734 = vpop.permute.xlu0 %733
      %vm735 = vcmask 23552
      %v736 = vsel %vm735, %v730, %v732
      %v737 = vsel %vm735, %v732, %v734
      %v740 = vsel %vm724, %v736, 0.0
      %v741 = vsel %vm725, %v737, 0.0
      %v742 = vadd.f32 %v662, %v740
      %v743 = vadd.f32 %v662, %v741
      %744 = vset.pattern.permute.xlu0 1
      %745 = vperm.xlu0 %744, %v669
      %v746 = vpop.permute.xlu0 %745
      %748 = vset.pattern.permute.xlu0 1
      %749 = vperm.xlu0 %748, %v670
      %v750 = vpop.permute.xlu0 %749
      %v752 = vmul.f32 %v663, %v746
      %v753 = vmul.f32 %v664, %v746
      %v754 = vmul.f32 %v665, %v746
      %v755 = vmul.f32 %v666, %v750
      %v756 = vmul.f32 %v667, %v750
      %v757 = vmul.f32 %v668, %v750
      %vm758 = vcmask 1048560
      %v759 = vsel %vm758, %v752, 0.0
      %vm760 = vcmask 1046512
      %v761 = vsel %vm760, %v755, 0.0
      %v762 = vadd.f32 %v759, %v761
      %v763 = vrot.slane %v762, 4
      %v764 = vadd.f32 %v762, %v763
      %v765 = vrot.slane %v764, 2
      %v766 = vadd.f32 %v764, %v765
      %v767 = vrot.slane %v766, 1
      %v768 = vadd.f32 %v766, %v767
      %v769 = vsel %vm698, %v756, 0.0
      %v770 = vadd.f32 %v753, %v769
      %v771 = vrot.slane %v770, 4
      %v772 = vadd.f32 %v770, %v771
      %v773 = vrot.slane %v772, 2
      %v774 = vadd.f32 %v772, %v773
      %v775 = vrot.slane %v774, 1
      %v776 = vadd.f32 %v774, %v775
      %vm777 = vcmask 1031168
      %v778 = vsel %vm777, %v754, 0.0
      %vm779 = vcmask 1029120
      %v780 = vsel %vm779, %v757, 0.0
      %v781 = vadd.f32 %v778, %v780
      %v782 = vrot.slane %v781, 4
      %v783 = vadd.f32 %v781, %v782
      %v784 = vrot.slane %v783, 2
      %v785 = vadd.f32 %v783, %v784
      %v786 = vrot.slane %v785, 1
      %v787 = vadd.f32 %v785, %v786
      %v788 = vadd.s32 %v660, 4294967294
      %v789 = vadd.s32 %v661, 4294967294
      %vm790 = vcmp.ge.s32.totalorder %v788, 0
      %vm791 = vcmp.ge.s32.totalorder %v789, 0
      %vm792 = vcmp.lt.s32.totalorder %v788, 16
      %vm793 = vcmp.lt.s32.totalorder %v789, 16
      %vm794 = vmand %vm790, %vm792
      %vm795 = vmand %vm791, %vm793
      %799 = vrot.lane.b32.xlu0 %v768, 2
      %v800 = vpop.permute.xlu0 %799
      %801 = vrot.lane.b32.xlu0 %v776, 2
      %v802 = vpop.permute.xlu0 %801
      %803 = vrot.lane.b32.xlu0 %v787, 2
      %v804 = vpop.permute.xlu0 %803
      %v805 = vsel %vm324, %v800, %v802
      %v806 = vsel %vm324, %v802, %v804
      %v809 = vsel %vm794, %v805, 0.0
      %v810 = vsel %vm795, %v806, 0.0
      %v811 = vadd.f32 %v742, %v809
      %v812 = vadd.f32 %v743, %v810
      %813 = vset.pattern.permute.xlu0 2
      %814 = vperm.xlu0 %813, %v669
      %v815 = vpop.permute.xlu0 %814
      %817 = vset.pattern.permute.xlu0 2
      %818 = vperm.xlu0 %817, %v670
      %v819 = vpop.permute.xlu0 %818
      %v821 = vmul.f32 %v663, %v815
      %v822 = vmul.f32 %v664, %v815
      %v823 = vmul.f32 %v665, %v815
      %v824 = vmul.f32 %v666, %v819
      %v825 = vmul.f32 %v667, %v819
      %v826 = vmul.f32 %v668, %v819
      %vm827 = vcmask 1048568
      %v828 = vsel %vm827, %v821, 0.0
      %vm829 = vcmask 1046520
      %v830 = vsel %vm829, %v824, 0.0
      %v831 = vadd.f32 %v828, %v830
      %v832 = vrot.slane %v831, 4
      %v833 = vadd.f32 %v831, %v832
      %v834 = vrot.slane %v833, 2
      %v835 = vadd.f32 %v833, %v834
      %v836 = vrot.slane %v835, 1
      %v837 = vadd.f32 %v835, %v836
      %v838 = vsel %vm698, %v825, 0.0
      %v839 = vadd.f32 %v822, %v838
      %v840 = vrot.slane %v839, 4
      %v841 = vadd.f32 %v839, %v840
      %v842 = vrot.slane %v841, 2
      %v843 = vadd.f32 %v841, %v842
      %v844 = vrot.slane %v843, 1
      %v845 = vadd.f32 %v843, %v844
      %vm846 = vcmask 1039360
      %v847 = vsel %vm846, %v823, 0.0
      %vm848 = vcmask 1037312
      %v849 = vsel %vm848, %v826, 0.0
      %v850 = vadd.f32 %v847, %v849
      %v851 = vrot.slane %v850, 4
      %v852 = vadd.f32 %v850, %v851
      %v853 = vrot.slane %v852, 2
      %v854 = vadd.f32 %v852, %v853
      %v855 = vrot.slane %v854, 1
      %v856 = vadd.f32 %v854, %v855
      %v857 = vadd.s32 %v660, 4294967295
      %v858 = vadd.s32 %v661, 4294967295
      %vm859 = vcmp.ge.s32.totalorder %v857, 0
      %vm860 = vcmp.ge.s32.totalorder %v858, 0
      %vm861 = vcmp.lt.s32.totalorder %v857, 16
      %vm862 = vcmp.lt.s32.totalorder %v858, 16
      %vm863 = vmand %vm859, %vm861
      %vm864 = vmand %vm860, %vm862
      %868 = vrot.lane.b32.xlu0 %v837, 1
      %v869 = vpop.permute.xlu0 %868
      %870 = vrot.lane.b32.xlu0 %v845, 1
      %v871 = vpop.permute.xlu0 %870
      %872 = vrot.lane.b32.xlu0 %v856, 1
      %v873 = vpop.permute.xlu0 %872
      %vm874 = vcmask 7168
      %v875 = vsel %vm874, %v869, %v871
      %v876 = vsel %vm874, %v871, %v873
      %v879 = vsel %vm863, %v875, 0.0
      %v880 = vsel %vm864, %v876, 0.0
      %v881 = vadd.f32 %v811, %v879
      %v882 = vadd.f32 %v812, %v880
      %883 = vset.pattern.permute.xlu0 3
      %884 = vperm.xlu0 %883, %v669
      %v885 = vpop.permute.xlu0 %884
      %887 = vset.pattern.permute.xlu0 3
      %888 = vperm.xlu0 %887, %v670
      %v889 = vpop.permute.xlu0 %888
      %v891 = vmul.f32 %v664, %v885
      %v892 = vmul.f32 %v665, %v885
      %v893 = vmul.f32 %v667, %v889
      %v894 = vmul.f32 %v668, %v889
      %v895 = vsel %vm698, %v893, 0.0
      %v896 = vadd.f32 %v891, %v895
      %v897 = vrot.slane %v896, 4
      %v898 = vadd.f32 %v896, %v897
      %v899 = vrot.slane %v898, 2
      %v900 = vadd.f32 %v898, %v899
      %v901 = vrot.slane %v900, 1
      %v902 = vadd.f32 %v900, %v901
      %v903 = vsel %vm698, %v894, 0.0
      %v904 = vadd.f32 %v892, %v903
      %v905 = vrot.slane %v904, 4
      %v906 = vadd.f32 %v904, %v905
      %v907 = vrot.slane %v906, 2
      %v908 = vadd.f32 %v906, %v907
      %v909 = vrot.slane %v908, 1
      %v910 = vadd.f32 %v908, %v909
      %vm911 = vcmp.ge.s32.totalorder %v660, 0
      %vm912 = vcmp.ge.s32.totalorder %v661, 0
      %vm913 = vcmp.lt.s32.totalorder %v660, 16
      %vm914 = vcmp.lt.s32.totalorder %v661, 16
      %vm915 = vmand %vm911, %vm913
      %vm916 = vmand %vm912, %vm914
      %v917 = vsel %vm915, %v902, 0.0
      %v918 = vsel %vm916, %v910, 0.0
      %v919 = vadd.f32 %v881, %v917
      %v920 = vadd.f32 %v882, %v918
      %v921 = vld [vmem:[#allocation2 + $0x8] sm:$0xff]
      %v922 = vld [vmem:[#allocation2 + $0x10] sm:$0xff]
      %v923 = vld [vmem:[#allocation2 + $0x18] sm:$0xff]
      %v924 = vld [vmem:[#allocation2 + $0x28] sm:$0x3f]
      %v925 = vld [vmem:[#allocation2 + $0x30] sm:$0x3f]
      %v926 = vld [vmem:[#allocation2 + $0x38] sm:$0x3f]
      %927 = vset.pattern.permute.xlu0 4
      %928 = vperm.xlu0 %927, %v669
      %v929 = vpop.permute.xlu0 %928
      %931 = vset.pattern.permute.xlu0 4
      %932 = vperm.xlu0 %931, %v670
      %v933 = vpop.permute.xlu0 %932
      %v935 = vmul.f32 %v921, %v929
      %v936 = vmul.f32 %v922, %v929
      %v937 = vmul.f32 %v923, %v929
      %v938 = vmul.f32 %v924, %v933
      %v939 = vmul.f32 %v925, %v933
      %v940 = vmul.f32 %v926, %v933
      %vm941 = vcmask 1047560
      %v942 = vsel %vm941, %v935, 0.0
      %vm943 = vcmask 1045512
      %v944 = vsel %vm943, %v938, 0.0
      %v945 = vadd.f32 %v942, %v944
      %v946 = vrot.slane %v945, 4
      %v947 = vadd.f32 %v945, %v946
      %v948 = vrot.slane %v947, 2
      %v949 = vadd.f32 %v947, %v948
      %v950 = vrot.slane %v949, 1
      %v951 = vadd.f32 %v949, %v950
      %v952 = vsel %vm698, %v939, 0.0
      %v953 = vadd.f32 %v936, %v952
      %v954 = vrot.slane %v953, 4
      %v955 = vadd.f32 %v953, %v954
      %v956 = vrot.slane %v955, 2
      %v957 = vadd.f32 %v955, %v956
      %v958 = vrot.slane %v957, 1
      %v959 = vadd.f32 %v957, %v958
      %v960 = vsel %vm874, %v937, 0.0
      %vm961 = vcmask 5120
      %v962 = vsel %vm961, %v940, 0.0
      %v963 = vadd.f32 %v960, %v962
      %v964 = vrot.slane %v963, 4
      %v965 = vadd.f32 %v963, %v964
      %v966 = vrot.slane %v965, 2
      %v967 = vadd.f32 %v965, %v966
      %v968 = vrot.slane %v967, 1
      %v969 = vadd.f32 %v967, %v968
      %v970 = vadd.s32 %v660, 1
      %v971 = vadd.s32 %v661, 1
      %vm972 = vcmp.ge.s32.totalorder %v970, 0
      %vm973 = vcmp.ge.s32.totalorder %v971, 0
      %vm974 = vcmp.lt.s32.totalorder %v970, 16
      %vm975 = vcmp.lt.s32.totalorder %v971, 16
      %vm976 = vmand %vm972, %vm974
      %vm977 = vmand %vm973, %vm975
      %981 = vrot.lane.b32.xlu0 %v951, 127
      %v982 = vpop.permute.xlu0 %981
      %983 = vrot.lane.b32.xlu0 %v959, 127
      %v984 = vpop.permute.xlu0 %983
      %985 = vrot.lane.b32.xlu0 %v969, 127
      %v986 = vpop.permute.xlu0 %985
      %v987 = vsel %vm846, %v982, %v984
      %v988 = vsel %vm846, %v984, %v986
      %v991 = vsel %vm976, %v987, 0.0
      %v992 = vsel %vm977, %v988, 0.0
      %v993 = vadd.f32 %v919, %v991
      %v994 = vadd.f32 %v920, %v992
      %995 = vset.pattern.permute.xlu0 5
      %996 = vperm.xlu0 %995, %v669
      %v997 = vpop.permute.xlu0 %996
      %999 = vset.pattern.permute.xlu0 5
      %1000 = vperm.xlu0 %999, %v670
      %v1001 = vpop.permute.xlu0 %1000
      %v1003 = vmul.f32 %v921, %v997
      %v1004 = vmul.f32 %v922, %v997
      %v1005 = vmul.f32 %v923, %v997
      %v1006 = vmul.f32 %v924, %v1001
      %v1007 = vmul.f32 %v925, %v1001
      %v1008 = vmul.f32 %v926, %v1001
      %vm1009 = vcmask 1047568
      %v1010 = vsel %vm1009, %v1003, 0.0
      %vm1011 = vcmask 1045520
      %v1012 = vsel %vm1011, %v1006, 0.0
      %v1013 = vadd.f32 %v1010, %v1012
      %v1014 = vrot.slane %v1013, 4
      %v1015 = vadd.f32 %v1013, %v1014
      %v1016 = vrot.slane %v1015, 2
      %v1017 = vadd.f32 %v1015, %v1016
      %v1018 = vrot.slane %v1017, 1
      %v1019 = vadd.f32 %v1017, %v1018
      %v1020 = vsel %vm698, %v1007, 0.0
      %v1021 = vadd.f32 %v1004, %v1020
      %v1022 = vrot.slane %v1021, 4
      %v1023 = vadd.f32 %v1021, %v1022
      %v1024 = vrot.slane %v1023, 2
      %v1025 = vadd.f32 %v1023, %v1024
      %v1026 = vrot.slane %v1025, 1
      %v1027 = vadd.f32 %v1025, %v1026
      %v1028 = vsel %vm324, %v1005, 0.0
      %vm1029 = vcmask 13312
      %v1030 = vsel %vm1029, %v1008, 0.0
      %v1031 = vadd.f32 %v1028, %v1030
      %v1032 = vrot.slane %v1031, 4
      %v1033 = vadd.f32 %v1031, %v1032
      %v1034 = vrot.slane %v1033, 2
      %v1035 = vadd.f32 %v1033, %v1034
      %v1036 = vrot.slane %v1035, 1
      %v1037 = vadd.f32 %v1035, %v1036
      %v1038 = vadd.s32 %v660, 2
      %v1039 = vadd.s32 %v661, 2
      %vm1040 = vcmp.ge.s32.totalorder %v1038, 0
      %vm1041 = vcmp.ge.s32.totalorder %v1039, 0
      %vm1042 = vcmp.lt.s32.totalorder %v1038, 16
      %vm1043 = vcmp.lt.s32.totalorder %v1039, 16
      %vm1044 = vmand %vm1040, %vm1042
      %vm1045 = vmand %vm1041, %vm1043
      %1049 = vrot.lane.b32.xlu0 %v1019, 126
      %v1050 = vpop.permute.xlu0 %1049
      %1051 = vrot.lane.b32.xlu0 %v1027, 126
      %v1052 = vpop.permute.xlu0 %1051
      %1053 = vrot.lane.b32.xlu0 %v1037, 126
      %v1054 = vpop.permute.xlu0 %1053
      %v1055 = vsel %vm777, %v1050, %v1052
      %v1056 = vsel %vm777, %v1052, %v1054
      %v1059 = vsel %vm1044, %v1055, 0.0
      %v1060 = vsel %vm1045, %v1056, 0.0
      %v1061 = vadd.f32 %v993, %v1059
      %v1062 = vadd.f32 %v994, %v1060
      %1063 = vset.pattern.permute.xlu0 6
      %1064 = vperm.xlu0 %1063, %v669
      %v1065 = vpop.permute.xlu0 %1064
      %1067 = vset.pattern.permute.xlu0 6
      %1068 = vperm.xlu0 %1067, %v670
      %v1069 = vpop.permute.xlu0 %1068
      %v1071 = vmul.f32 %v921, %v1065
      %v1072 = vmul.f32 %v922, %v1065
      %v1073 = vmul.f32 %v923, %v1065
      %v1074 = vmul.f32 %v924, %v1069
      %v1075 = vmul.f32 %v925, %v1069
      %v1076 = vmul.f32 %v926, %v1069
      %vm1077 = vcmask 1047576
      %v1078 = vsel %vm1077, %v1071, 0.0
      %vm1079 = vcmask 1045528
      %v1080 = vsel %vm1079, %v1074, 0.0
      %v1081 = vadd.f32 %v1078, %v1080
      %v1082 = vrot.slane %v1081, 4
      %v1083 = vadd.f32 %v1081, %v1082
      %v1084 = vrot.slane %v1083, 2
      %v1085 = vadd.f32 %v1083, %v1084
      %v1086 = vrot.slane %v1085, 1
      %v1087 = vadd.f32 %v1085, %v1086
      %v1088 = vsel %vm698, %v1075, 0.0
      %v1089 = vadd.f32 %v1072, %v1088
      %v1090 = vrot.slane %v1089, 4
      %v1091 = vadd.f32 %v1089, %v1090
      %v1092 = vrot.slane %v1091, 2
      %v1093 = vadd.f32 %v1091, %v1092
      %v1094 = vrot.slane %v1093, 1
      %v1095 = vadd.f32 %v1093, %v1094
      %v1096 = vsel %vm735, %v1073, 0.0
      %vm1097 = vcmask 21504
      %v1098 = vsel %vm1097, %v1076, 0.0
      %v1099 = vadd.f32 %v1096, %v1098
      %v1100 = vrot.slane %v1099, 4
      %v1101 = vadd.f32 %v1099, %v1100
      %v1102 = vrot.slane %v1101, 2
      %v1103 = vadd.f32 %v1101, %v1102
      %v1104 = vrot.slane %v1103, 1
      %v1105 = vadd.f32 %v1103, %v1104
      %v1106 = vadd.s32 %v660, 3
      %v1107 = vadd.s32 %v661, 3
      %vm1108 = vcmp.ge.s32.totalorder %v1106, 0
      %vm1109 = vcmp.ge.s32.totalorder %v1107, 0
      %vm1110 = vcmp.lt.s32.totalorder %v1106, 16
      %vm1111 = vcmp.lt.s32.totalorder %v1107, 16
      %vm1112 = vmand %vm1108, %vm1110
      %vm1113 = vmand %vm1109, %vm1111
      %1117 = vrot.lane.b32.xlu0 %v1087, 125
      %v1118 = vpop.permute.xlu0 %1117
      %1119 = vrot.lane.b32.xlu0 %v1095, 125
      %v1120 = vpop.permute.xlu0 %1119
      %1121 = vrot.lane.b32.xlu0 %v1105, 125
      %v1122 = vpop.permute.xlu0 %1121
      %v1123 = vsel %vm707, %v1118, %v1120
      %v1124 = vsel %vm707, %v1120, %v1122
      %v1127 = vsel %vm1112, %v1123, 0.0
      %v1128 = vsel %vm1113, %v1124, 0.0
      %v1129 = vadd.f32 %v1061, %v1127
      %v1130 = vadd.f32 %v1062, %v1128
      %v1131 = vld [vmem:[%s279] sm:$0xff]
      %v1132 = vld [vmem:[%s279 + $0x8] sm:$0xff]
      %v1133 = vld [vmem:[%s279 + $0x10] sm:$0xff]
      %v1134 = vld [vmem:[%s279 + $0x18] sm:$0xff]
      %v1135 = vld [vmem:[%s279 + $0x20] sm:$0xff]
      %v1136 = vld [vmem:[%s279 + $0x28] sm:$0xff]
      %v1137 = vld [vmem:[%s279 + $0x30] sm:$0xff]
      %v1138 = vld [vmem:[%s279 + $0x38] sm:$0xff]
      %v1139 = vxor.u32 %v1129, 2147483648
      %v1140 = vxor.u32 %v1130, 2147483648
      %v1141 = vmul.f32 %v1139, 1.442695
      %v1142 = vpow.pop %v1141
      %v1143 = vmul.f32 %v1140, 1.442695
      %v1144 = vpow.pop %v1143
      %v1145 = vadd.f32 %v1142, 1.0
      %v1146 = vadd.f32 %v1144, 1.0
      %v1147 = vrcp.pop %v1145
      %v1148 = vmul.f32 1.0, %v1147
      %v1149 = vrcp.pop %v1146
      %v1150 = vmul.f32 1.0, %v1149
      %v1151 = vlaneseq
      %v1152 = vshrl.u32 %v1151, 7
      %v1153 = vsub.s32 0, %v1152
      %v1154 = vrot.slane %v1148, %v1153
      %v1155 = vlaneseq
      %v1156 = vshrl.u32 %v1155, 7
      %v1157 = vsub.s32 0, %v1156
      %v1158 = vrot.slane %v1150, %v1157
      %v1159 = vmul.f32 %v1131, %v1154
      %v1160 = vmul.f32 %v1132, %v1158
      %v1161 = vmul.f32 %v1133, %v1154
      %v1162 = vmul.f32 %v1134, %v1158
      %v1163 = vmul.f32 %v1135, %v1154
      %v1164 = vmul.f32 %v1136, %v1158
      %v1165 = vmul.f32 %v1137, %v1154
      %v1166 = vmul.f32 %v1138, %v1158
      %1167 = vst [vmem:[%s279] sm:$0xff] %v1159
      %1168 = vst [vmem:[%s279 + $0x8] sm:$0xff] %v1160
      %1169 = vst [vmem:[%s279 + $0x10] sm:$0xff] %v1161
      %1170 = vst [vmem:[%s279 + $0x18] sm:$0xff] %v1162
      %1171 = vst [vmem:[%s279 + $0x20] sm:$0xff] %v1163
      %1172 = vst [vmem:[%s279 + $0x28] sm:$0xff] %v1164
      %1173 = vst [vmem:[%s279 + $0x30] sm:$0xff] %v1165
      %1174 = vst [vmem:[%s279 + $0x38] sm:$0xff] %v1166
      %p1175 = scmp.lt.s32.totalorder %s19, 1
      %s1176 = scalar_select %p1175, %s19, 1
      %s1177 = smul.addr %s1176, 8
      %s1178 = smul.addr %s1177, 8
      %s1179 = scalar_lea.vmem %s7, %s1178
      // Predicated region
      $region49: #{cbam_forward.1} parent=47 // pred_check
        %p1180 = pneg %p189
      $region50: #{cbam_forward.1} parent=47 // pred_check_branch
        %1182 = sbr.rel (%p1180) target = $region52
      $region51: #{cbam_forward.1} parent=47 // pred_region
        _
      $region52: #{cbam_forward.1} parent=47 // pred_fallthru
        _
    $region48: #{cbam_forward.1} parent=5 // pred_fallthru
      _
    %p1183 = scmp.le.s32.totalorder 2, %s14
    // Predicated region
    $region53: #{cbam_forward.1} parent=5 // pred_check
      %p1184 = pneg %p1183
    $region54: #{cbam_forward.1} parent=5 // pred_check_branch
      %1186 = sbr.rel (%p1184) target = $region56
    $region55: #{cbam_forward.1} parent=5 // pred_region
      %s1187 = ssub.s32 %s14, 2
      // Predicated region
      $region57: #{cbam_forward.1} parent=55 // pred_check
        %p1188 = pneg %p195
      $region58: #{cbam_forward.1} parent=55 // pred_check_branch
        %1190 = sbr.rel (%p1188) target = $region60
      $region59: #{cbam_forward.1} parent=55 // pred_region
        %p1191 = scmp.lt.s32.totalorder %s20, 1
        %s1192 = scalar_select %p1191, %s20, 1
        %s1193 = smul.addr %s1192, 8
        %s1194 = smul.addr %s1193, 8
        %s1195 = scalar_lea.vmem %s7, %s1194
      $region60: #{cbam_forward.1} parent=55 // pred_fallthru
        _
    $region56: #{cbam_forward.1} parent=5 // pred_fallthru
      _
  $region6: #{cbam_forward.1} parent=0 // loop_footer
    %s18 = sadd.s32 1, %s14
  $region7: #{cbam_forward.1} parent=0 // loop_footer_branch
    %13 = sbr.rel target = $region3
  $region8: #{cbam_forward.1} parent=0 // loop_exit
    _

</llo_original>
